<compile_context>
chip_gen: v6e
topology: v6e:2x2x1
jax: 0.10.0
libtpu: 0.0.40
codegen_flags: <defaults>
</compile_context>

<pallas_src>
import math
from functools import partial

import jax
import jax.numpy as jnp
from jax.experimental import pallas as pl
from jax.experimental.pallas import tpu as pltpu

# Scoped-VMEM allowance: above the 16/32 MiB defaults, below v7x's 64 MiB physical.
_VMEM_LIMIT = 48 * 1024 * 1024

# dot_general dims for x @ w^T (contract dim 1 of both operands; no transpose op).
_NT = (((1,), (1,)), ((), ()))


# ---------------------------------------------------------------------------
# Kernel 1: fused Q/K/V projection  [q | k | v] = x @ W_qkv^T + b_qkv
# ---------------------------------------------------------------------------
def _qkv_kernel(x_ref, w_ref, b_ref, q_ref, k_ref, v_ref, *, compute_dtype):
    # x: (TM, D), w: (3D, D), b: (1, 3D)  ->  q/k/v: (TM, D)
    D = x_ref.shape[1]
    x = x_ref[...].astype(compute_dtype)
    w = w_ref[...].astype(compute_dtype)
    y = jax.lax.dot_general(x, w, _NT, preferred_element_type=jnp.float32)
    y = y + b_ref[...]
    q_ref[...] = y[:, :D].astype(q_ref.dtype)
    k_ref[...] = y[:, D:2 * D].astype(k_ref.dtype)
    v_ref[...] = y[:, 2 * D:3 * D].astype(v_ref.dtype)


def pallas_qkv_proj(x2d, w_qkv, b_qkv, *, compute_dtype=jnp.float32, tm=256):
    M, D = x2d.shape
    Dout = w_qkv.shape[0]                       # 3 * D
    tm = M if M <= tm else tm                   # tile M; full slab for tiny demo shapes
    grid = (pl.cdiv(M, tm),)
    out_sd = jax.ShapeDtypeStruct((M, D), x2d.dtype)
    kern = partial(_qkv_kernel, compute_dtype=compute_dtype)
    return pl.pallas_call(
        kern,
        out_shape=(out_sd, out_sd, out_sd),
        grid_spec=pltpu.PrefetchScalarGridSpec(
            num_scalar_prefetch=0,
            grid=grid,
            in_specs=[
                pl.BlockSpec((tm, D), lambda i: (i, 0)),      # x tile (pipelined over M)
                pl.BlockSpec((Dout, D), lambda i: (0, 0)),    # fused weight (stays resident)
                pl.BlockSpec((1, Dout), lambda i: (0, 0)),    # fused bias
            ],
            out_specs=(
                pl.BlockSpec((tm, D), lambda i: (i, 0)),
                pl.BlockSpec((tm, D), lambda i: (i, 0)),
                pl.BlockSpec((tm, D), lambda i: (i, 0)),
            ),
        ),
        compiler_params=pltpu.CompilerParams(
            dimension_semantics=("parallel",),
            vmem_limit_bytes=_VMEM_LIMIT),
    )(x2d, w_qkv, b_qkv.reshape(1, Dout))


# ---------------------------------------------------------------------------
# Kernel 2: per-batch multi-head attention fused with the output projection
# ---------------------------------------------------------------------------
def _attn_kernel(q_ref, k_ref, v_ref, wo_ref, bo_ref, o_ref, ctx_scr,
                 *, nhead, scale, compute_dtype):
    # q/k/v: (1, S, D); wo: (D, D); bo: (1, D); o: (1, S, D); ctx_scr: (S, D)
    S, D = ctx_scr.shape
    dq = D // nhead
    q = (q_ref[0] * scale).astype(compute_dtype)   # fold softmax scale into Q (D-wide, once)
    k = k_ref[0].astype(compute_dtype)
    v = v_ref[0].astype(compute_dtype)

    # Heads are column slices of the lane-dense (S, D) slab; the unrolled loop
    # keeps every intermediate in VMEM/vregs (no HBM round trips, no HBM-level
    # head-split transposes).
    for h in range(nhead):
        sl = slice(h * dq, (h + 1) * dq)
        s = jax.lax.dot_general(q[:, sl], k[:, sl], _NT,
                                preferred_element_type=jnp.float32)       # (S, S)
        s = s - jnp.max(s, axis=-1, keepdims=True)                        # stable softmax
        p = jnp.exp(s)
        p = p * pl.reciprocal(jnp.sum(p, axis=-1, keepdims=True), approx=True)
        # TODO(synk): attention dropout (self.a_att_dropout) omitted — eval-mode identity.
        ctx_scr[:, sl] = jnp.dot(p.astype(compute_dtype), v[:, sl],
                                 preferred_element_type=jnp.float32)      # (S, dq)

    # Fused output projection: (S, D) @ wo^T + bo, stored lane-dense.
    out = jax.lax.dot_general(ctx_scr[...].astype(compute_dtype),
                              wo_ref[...].astype(compute_dtype), _NT,
                              preferred_element_type=jnp.float32)
    o_ref[0] = (out + bo_ref[...]).astype(o_ref.dtype)


def pallas_attention_outproj(q, k, v, w_out, b_out, *, nhead,
                             compute_dtype=jnp.float32):
    B, S, D = q.shape
    scale = 1.0 / math.sqrt(D // nhead)
    kern = partial(_attn_kernel, nhead=nhead, scale=scale,
                   compute_dtype=compute_dtype)
    qkv_blk = pl.BlockSpec((1, S, D), lambda b: (b, 0, 0))
    return pl.pallas_call(
        kern,
        out_shape=jax.ShapeDtypeStruct((B, S, D), q.dtype),
        grid_spec=pltpu.PrefetchScalarGridSpec(
            num_scalar_prefetch=0,
            grid=(B,),
            in_specs=[
                qkv_blk, qkv_blk, qkv_blk,
                pl.BlockSpec((D, D), lambda b: (0, 0)),    # out-proj weight (resident)
                pl.BlockSpec((1, D), lambda b: (0, 0)),    # out-proj bias
            ],
            out_specs=pl.BlockSpec((1, S, D), lambda b: (b, 0, 0)),
            scratch_shapes=[pltpu.VMEM((S, D), jnp.float32)],
        ),
        compiler_params=pltpu.CompilerParams(
            dimension_semantics=("parallel",),
            vmem_limit_bytes=_VMEM_LIMIT),
    )(q, k, v, w_out, b_out.reshape(1, D))


# ---------------------------------------------------------------------------
# multihead_ca forward
# ---------------------------------------------------------------------------
def multihead_ca_forward(a_src, params, nhead, *, compute_dtype=jnp.float32):
    """a_src: (S, B, D) -> (S, B, D).  compute_dtype=jnp.bfloat16 enables the
    bf16-operand / f32-accumulate MXU path (recommended on v6e/v7x)."""
    S, B, D = a_src.shape

    # Fused QKV weight/bias (in a real model these would be stored pre-fused).
    w_qkv = jnp.concatenate([params["w0"], params["w1"], params["w2"]], axis=0)
    b_qkv = jnp.concatenate([params["b0"], params["b1"], params["b2"]], axis=0)

    # (S, B, D) -> (B*S, D): the single input-side layout change.
    x2d = jnp.transpose(a_src, (1, 0, 2)).reshape(B * S, D)

    q2d, k2d, v2d = pallas_qkv_proj(x2d, w_qkv, b_qkv, compute_dtype=compute_dtype)
    q = q2d.reshape(B, S, D)
    k = k2d.reshape(B, S, D)
    v = v2d.reshape(B, S, D)

    out_bsd = pallas_attention_outproj(q, k, v, params["w3"], params["b3"],
                                       nhead=nhead, compute_dtype=compute_dtype)
    # (B, S, D) -> (S, B, D): the single output-side layout change.
    return jnp.transpose(out_bsd, (1, 0, 2))


def init_params(key, d_model):
    # deterministic nn.Linear-style init (uniform in [-1/sqrt(fan_in), 1/sqrt(fan_in)])
    bound = 1.0 / math.sqrt(d_model)
    params = {}
    for i in range(4):
        key, kw, kb = jax.random.split(key, 3)
        params[f"w{i}"] = jax.random.uniform(
            kw, (d_model, d_model), jnp.float32, -bound, bound)
        params[f"b{i}"] = jax.random.uniform(
            kb, (d_model,), jnp.float32, -bound, bound)
    return params


# ---------------------------------------------------------------------------
# reference (pure JAX) for a sanity check
# ---------------------------------------------------------------------------
def reference_forward(a_src, params, nhead):
    S, B, D = a_src.shape
    d_qkv = D // nhead
    x = jnp.transpose(a_src, (1, 0, 2))
    def lin(i, z):
        return z @ params[f"w{i}"].T + params[f"b{i}"]
    def split(z):
        return jnp.transpose(z.reshape(B, S, nhead, d_qkv), (0, 2, 1, 3))
    q, k, v = split(lin(0, x)), split(lin(1, x)), split(lin(2, x))
    s = jnp.einsum("bhqd,bhkd->bhqk", q, k) / math.sqrt(d_qkv)
    p = jax.nn.softmax(s, axis=-1)
    a = jnp.einsum("bhqk,bhkd->bhqd", p, v)
    a = jnp.transpose(a, (0, 2, 1, 3))
    a = jnp.transpose(a, (1, 0, 2, 3)).reshape(S, B, D)
    return lin(3, a)


if __name__ == "__main__":
    S, B = 8, 2
    d_model, nhead = 32, 4

    key = jax.random.PRNGKey(0)
    key, kx = jax.random.split(key)
    a_src = jax.random.normal(kx, (S, B, d_model), jnp.float32)
    params = init_params(key, d_model)

    fwd = jax.jit(partial(multihead_ca_forward, nhead=nhead))
    out = jax.block_until_ready(fwd(a_src, params))

    ref = reference_forward(a_src, params, nhead)
    assert out.shape == (S, B, d_model)
    # Tolerance relaxed vs pure f32 only because the softmax denominator uses
    # the EUP approximate reciprocal (pl.reciprocal(..., approx=True)).
    assert jnp.allclose(out, ref, atol=2e-2, rtol=2e-2), "mismatch vs reference"

    print("KERNEL_OK")
</pallas_src>

<mosaic_0001>
module attributes {stable_mosaic.version = 11 : i64} {
  func.func @_qkv_kernel(%arg0: i32, %arg1: memref<16x32xf32, #tpu.memory_space<vmem>>, %arg2: memref<96x32xf32, #tpu.memory_space<vmem>>, %arg3: memref<1x96xf32, #tpu.memory_space<vmem>>, %arg4: memref<16x32xf32, #tpu.memory_space<vmem>>, %arg5: memref<16x32xf32, #tpu.memory_space<vmem>>, %arg6: memref<16x32xf32, #tpu.memory_space<vmem>>) attributes {dimension_semantics = [#tpu.dimension_semantics<parallel>], iteration_bounds = array<i64: 1>, scalar_prefetch = 0 : i64, scratch_operands = 0 : i64, tpu.core_type = #tpu.core_type<tc>, window_params = [{transform_indices = @transform_0, window_bounds = array<i64: 16, 32>}, {pipeline_mode = #tpu.pipeline_mode<synchronous>, transform_indices = @transform_1, window_bounds = array<i64: 96, 32>}, {pipeline_mode = #tpu.pipeline_mode<synchronous>, transform_indices = @transform_2, window_bounds = array<i64: 1, 96>}, {transform_indices = @transform_3, window_bounds = array<i64: 16, 32>}, {transform_indices = @transform_4, window_bounds = array<i64: 16, 32>}, {transform_indices = @transform_5, window_bounds = array<i64: 16, 32>}]} {
    %c0 = arith.constant 0 : index
    %c0_0 = arith.constant 0 : index
    %0 = vector.load %arg1[%c0, %c0_0] : memref<16x32xf32, #tpu.memory_space<vmem>>, vector<16x32xf32>
    %c0_1 = arith.constant 0 : index
    %c0_2 = arith.constant 0 : index
    %1 = vector.load %arg2[%c0_1, %c0_2] : memref<96x32xf32, #tpu.memory_space<vmem>>, vector<96x32xf32>
    %cst = arith.constant dense<0.000000e+00> : vector<16x96xf32>
    %2 = tpu.matmul %0, %1, %cst {dimension_numbers = #tpu.dot_dimension_numbers<[1], [1], [0], [0], [0, 0, 1, 0], [], []>} : vector<16x32xf32>, vector<96x32xf32>, vector<16x96xf32> -> vector<16x96xf32>
    %c0_3 = arith.constant 0 : index
    %c0_4 = arith.constant 0 : index
    %3 = vector.load %arg3[%c0_3, %c0_4] : memref<1x96xf32, #tpu.memory_space<vmem>>, vector<1x96xf32>
    %4 = vector.broadcast %3 : vector<1x96xf32> to vector<16x96xf32>
    %5 = arith.addf %2, %4 : vector<16x96xf32>
    %6 = vector.extract_strided_slice %5 {offsets = [0, 0], sizes = [16, 32], strides = [1, 1]} : vector<16x96xf32> to vector<16x32xf32>
    %c0_5 = arith.constant 0 : index
    %c0_6 = arith.constant 0 : index
    %7 = vector.load %arg4[%c0_5, %c0_6] : memref<16x32xf32, #tpu.memory_space<vmem>>, vector<16x32xf32>
    tpu.vector_store %arg4[%c0_5, %c0_6], %6 {strides = array<i32>} : memref<16x32xf32, #tpu.memory_space<vmem>>, vector<16x32xf32>,
    %8 = vector.extract_strided_slice %5 {offsets = [0, 32], sizes = [16, 32], strides = [1, 1]} : vector<16x96xf32> to vector<16x32xf32>
    %c0_7 = arith.constant 0 : index
    %c0_8 = arith.constant 0 : index
    %9 = vector.load %arg5[%c0_7, %c0_8] : memref<16x32xf32, #tpu.memory_space<vmem>>, vector<16x32xf32>
    tpu.vector_store %arg5[%c0_7, %c0_8], %8 {strides = array<i32>} : memref<16x32xf32, #tpu.memory_space<vmem>>, vector<16x32xf32>,
    %10 = vector.extract_strided_slice %5 {offsets = [0, 64], sizes = [16, 32], strides = [1, 1]} : vector<16x96xf32> to vector<16x32xf32>
    %c0_9 = arith.constant 0 : index
    %c0_10 = arith.constant 0 : index
    %11 = vector.load %arg6[%c0_9, %c0_10] : memref<16x32xf32, #tpu.memory_space<vmem>>, vector<16x32xf32>
    tpu.vector_store %arg6[%c0_9, %c0_10], %10 {strides = array<i32>} : memref<16x32xf32, #tpu.memory_space<vmem>>, vector<16x32xf32>,
    return
  }
  func.func @transform_0(%arg0: i32) -> (i32, i32) {
    %c0_i32 = arith.constant 0 : i32
    %c0_i32_0 = arith.constant 0 : i32
    return %arg0, %c0_i32 : i32, i32
  }
  func.func @transform_1(%arg0: i32) -> (i32, i32) {
    %c0_i32 = arith.constant 0 : i32
    %c0_i32_0 = arith.constant 0 : i32
    %c0_i32_1 = arith.constant 0 : i32
    return %c0_i32, %c0_i32_0 : i32, i32
  }
  func.func @transform_2(%arg0: i32) -> (i32, i32) {
    %c0_i32 = arith.constant 0 : i32
    %c0_i32_0 = arith.constant 0 : i32
    %c0_i32_1 = arith.constant 0 : i32
    return %c0_i32, %c0_i32_0 : i32, i32
  }
  func.func @transform_3(%arg0: i32) -> (i32, i32) {
    %c0_i32 = arith.constant 0 : i32
    %c0_i32_0 = arith.constant 0 : i32
    return %arg0, %c0_i32 : i32, i32
  }
  func.func @transform_4(%arg0: i32) -> (i32, i32) {
    %c0_i32 = arith.constant 0 : i32
    %c0_i32_0 = arith.constant 0 : i32
    return %arg0, %c0_i32 : i32, i32
  }
  func.func @transform_5(%arg0: i32) -> (i32, i32) {
    %c0_i32 = arith.constant 0 : i32
    %c0_i32_0 = arith.constant 0 : i32
    return %arg0, %c0_i32 : i32, i32
  }
}

module attributes {stable_mosaic.version = 11 : i64} {
  func.func @_attn_kernel(%arg0: i32, %arg1: memref<1x8x32xf32, #tpu.memory_space<vmem>>, %arg2: memref<1x8x32xf32, #tpu.memory_space<vmem>>, %arg3: memref<1x8x32xf32, #tpu.memory_space<vmem>>, %arg4: memref<32x32xf32, #tpu.memory_space<vmem>>, %arg5: memref<1x32xf32, #tpu.memory_space<vmem>>, %arg6: memref<1x8x32xf32, #tpu.memory_space<vmem>>, %arg7: memref<8x32xf32, #tpu.memory_space<vmem>>) attributes {dimension_semantics = [#tpu.dimension_semantics<parallel>], iteration_bounds = array<i64: 2>, scalar_prefetch = 0 : i64, scratch_operands = 1 : i64, tpu.core_type = #tpu.core_type<tc>, window_params = [{transform_indices = @transform_0, window_bounds = array<i64: 1, 8, 32>}, {transform_indices = @transform_1, window_bounds = array<i64: 1, 8, 32>}, {transform_indices = @transform_2, window_bounds = array<i64: 1, 8, 32>}, {pipeline_mode = #tpu.pipeline_mode<synchronous>, transform_indices = @transform_3, window_bounds = array<i64: 32, 32>}, {pipeline_mode = #tpu.pipeline_mode<synchronous>, transform_indices = @transform_4, window_bounds = array<i64: 1, 32>}, {transform_indices = @transform_5, window_bounds = array<i64: 1, 8, 32>}]} {
    %c0 = arith.constant 0 : index
    %c0_0 = arith.constant 0 : index
    %c0_1 = arith.constant 0 : index
    %0 = vector.load %arg1[%c0, %c0_0, %c0_1] : memref<1x8x32xf32, #tpu.memory_space<vmem>>, vector<1x8x32xf32>
    %1 = vector.shape_cast %0 : vector<1x8x32xf32> to vector<8x32xf32>
    %cst = arith.constant 0.353553385 : f32
    %2 = vector.broadcast %cst : f32 to vector<8x32xf32>
    %3 = arith.mulf %1, %2 : vector<8x32xf32>
    %c0_2 = arith.constant 0 : index
    %c0_3 = arith.constant 0 : index
    %c0_4 = arith.constant 0 : index
    %4 = vector.load %arg2[%c0_2, %c0_3, %c0_4] : memref<1x8x32xf32, #tpu.memory_space<vmem>>, vector<1x8x32xf32>
    %5 = vector.shape_cast %4 : vector<1x8x32xf32> to vector<8x32xf32>
    %c0_5 = arith.constant 0 : index
    %c0_6 = arith.constant 0 : index
    %c0_7 = arith.constant 0 : index
    %6 = vector.load %arg3[%c0_5, %c0_6, %c0_7] : memref<1x8x32xf32, #tpu.memory_space<vmem>>, vector<1x8x32xf32>
    %7 = vector.shape_cast %6 : vector<1x8x32xf32> to vector<8x32xf32>
    %8 = vector.extract_strided_slice %3 {offsets = [0, 0], sizes = [8, 8], strides = [1, 1]} : vector<8x32xf32> to vector<8x8xf32>
    %9 = vector.extract_strided_slice %5 {offsets = [0, 0], sizes = [8, 8], strides = [1, 1]} : vector<8x32xf32> to vector<8x8xf32>
    %cst_8 = arith.constant dense<0.000000e+00> : vector<8x8xf32>
    %10 = tpu.matmul %8, %9, %cst_8 {dimension_numbers = #tpu.dot_dimension_numbers<[1], [1], [0], [0], [0, 0, 1, 0], [], []>} : vector<8x8xf32>, vector<8x8xf32>, vector<8x8xf32> -> vector<8x8xf32>
    %cst_9 = arith.constant dense<0xFF800000> : vector<8xf32>
    %11 = vector.multi_reduction <maximumf>, %10, %cst_9 [1] : vector<8x8xf32> to vector<8xf32>
    %12 = vector.shape_cast %11 : vector<8xf32> to vector<8x1xf32>
    %13 = vector.broadcast %12 : vector<8x1xf32> to vector<8x8xf32>
    %14 = arith.subf %10, %13 : vector<8x8xf32>
    %15 = math.exp %14 : vector<8x8xf32>
    %cst_10 = arith.constant dense<0.000000e+00> : vector<8xf32>
    %16 = vector.multi_reduction <add>, %15, %cst_10 [1] : vector<8x8xf32> to vector<8xf32>
    %17 = vector.shape_cast %16 : vector<8xf32> to vector<8x1xf32>
    %18 = tpu.reciprocal %17 {approx = true} : vector<8x1xf32> -> vector<8x1xf32>
    %19 = vector.broadcast %18 : vector<8x1xf32> to vector<8x8xf32>
    %20 = arith.mulf %15, %19 : vector<8x8xf32>
    %21 = vector.extract_strided_slice %7 {offsets = [0, 0], sizes = [8, 8], strides = [1, 1]} : vector<8x32xf32> to vector<8x8xf32>
    %cst_11 = arith.constant dense<0.000000e+00> : vector<8x8xf32>
    %22 = tpu.matmul %20, %21, %cst_11 {dimension_numbers = #tpu.dot_dimension_numbers<[1], [0], [0], [1], [0, 0, 1, 1], [], []>} : vector<8x8xf32>, vector<8x8xf32>, vector<8x8xf32> -> vector<8x8xf32>
    %c0_12 = arith.constant 0 : index
    %c0_13 = arith.constant 0 : index
    %23 = vector.load %arg7[%c0_12, %c0_13] : memref<8x32xf32, #tpu.memory_space<vmem>>, vector<8x8xf32>
    tpu.vector_store %arg7[%c0_12, %c0_13], %22 {strides = array<i32>} : memref<8x32xf32, #tpu.memory_space<vmem>>, vector<8x8xf32>,
    %24 = vector.extract_strided_slice %3 {offsets = [0, 8], sizes = [8, 8], strides = [1, 1]} : vector<8x32xf32> to vector<8x8xf32>
    %25 = vector.extract_strided_slice %5 {offsets = [0, 8], sizes = [8, 8], strides = [1, 1]} : vector<8x32xf32> to vector<8x8xf32>
    %cst_14 = arith.constant dense<0.000000e+00> : vector<8x8xf32>
    %26 = tpu.matmul %24, %25, %cst_14 {dimension_numbers = #tpu.dot_dimension_numbers<[1], [1], [0], [0], [0, 0, 1, 0], [], []>} : vector<8x8xf32>, vector<8x8xf32>, vector<8x8xf32> -> vector<8x8xf32>
    %cst_15 = arith.constant dense<0xFF800000> : vector<8xf32>
    %27 = vector.multi_reduction <maximumf>, %26, %cst_15 [1] : vector<8x8xf32> to vector<8xf32>
    %28 = vector.shape_cast %27 : vector<8xf32> to vector<8x1xf32>
    %29 = vector.broadcast %28 : vector<8x1xf32> to vector<8x8xf32>
    %30 = arith.subf %26, %29 : vector<8x8xf32>
    %31 = math.exp %30 : vector<8x8xf32>
    %cst_16 = arith.constant dense<0.000000e+00> : vector<8xf32>
    %32 = vector.multi_reduction <add>, %31, %cst_16 [1] : vector<8x8xf32> to vector<8xf32>
    %33 = vector.shape_cast %32 : vector<8xf32> to vector<8x1xf32>
    %34 = tpu.reciprocal %33 {approx = true} : vector<8x1xf32> -> vector<8x1xf32>
    %35 = vector.broadcast %34 : vector<8x1xf32> to vector<8x8xf32>
    %36 = arith.mulf %31, %35 : vector<8x8xf32>
    %37 = vector.extract_strided_slice %7 {offsets = [0, 8], sizes = [8, 8], strides = [1, 1]} : vector<8x32xf32> to vector<8x8xf32>
    %cst_17 = arith.constant dense<0.000000e+00> : vector<8x8xf32>
    %38 = tpu.matmul %36, %37, %cst_17 {dimension_numbers = #tpu.dot_dimension_numbers<[1], [0], [0], [1], [0, 0, 1, 1], [], []>} : vector<8x8xf32>, vector<8x8xf32>, vector<8x8xf32> -> vector<8x8xf32>
    %c0_18 = arith.constant 0 : index
    %c8 = arith.constant 8 : index
    %39 = vector.load %arg7[%c0_18, %c8] : memref<8x32xf32, #tpu.memory_space<vmem>>, vector<8x8xf32>
    tpu.vector_store %arg7[%c0_18, %c8], %38 {strides = array<i32>} : memref<8x32xf32, #tpu.memory_space<vmem>>, vector<8x8xf32>,
    %40 = vector.extract_strided_slice %3 {offsets = [0, 16], sizes = [8, 8], strides = [1, 1]} : vector<8x32xf32> to vector<8x8xf32>
    %41 = vector.extract_strided_slice %5 {offsets = [0, 16], sizes = [8, 8], strides = [1, 1]} : vector<8x32xf32> to vector<8x8xf32>
    %cst_19 = arith.constant dense<0.000000e+00> : vector<8x8xf32>
    %42 = tpu.matmul %40, %41, %cst_19 {dimension_numbers = #tpu.dot_dimension_numbers<[1], [1], [0], [0], [0, 0, 1, 0], [], []>} : vector<8x8xf32>, vector<8x8xf32>, vector<8x8xf32> -> vector<8x8xf32>
    %cst_20 = arith.constant dense<0xFF800000> : vector<8xf32>
    %43 = vector.multi_reduction <maximumf>, %42, %cst_20 [1] : vector<8x8xf32> to vector<8xf32>
    %44 = vector.shape_cast %43 : vector<8xf32> to vector<8x1xf32>
    %45 = vector.broadcast %44 : vector<8x1xf32> to vector<8x8xf32>
    %46 = arith.subf %42, %45 : vector<8x8xf32>
    %47 = math.exp %46 : vector<8x8xf32>
    %cst_21 = arith.constant dense<0.000000e+00> : vector<8xf32>
    %48 = vector.multi_reduction <add>, %47, %cst_21 [1] : vector<8x8xf32> to vector<8xf32>
    %49 = vector.shape_cast %48 : vector<8xf32> to vector<8x1xf32>
    %50 = tpu.reciprocal %49 {approx = true} : vector<8x1xf32> -> vector<8x1xf32>
    %51 = vector.broadcast %50 : vector<8x1xf32> to vector<8x8xf32>
    %52 = arith.mulf %47, %51 : vector<8x8xf32>
    %53 = vector.extract_strided_slice %7 {offsets = [0, 16], sizes = [8, 8], strides = [1, 1]} : vector<8x32xf32> to vector<8x8xf32>
    %cst_22 = arith.constant dense<0.000000e+00> : vector<8x8xf32>
    %54 = tpu.matmul %52, %53, %cst_22 {dimension_numbers = #tpu.dot_dimension_numbers<[1], [0], [0], [1], [0, 0, 1, 1], [], []>} : vector<8x8xf32>, vector<8x8xf32>, vector<8x8xf32> -> vector<8x8xf32>
    %c0_23 = arith.constant 0 : index
    %c16 = arith.constant 16 : index
    %55 = vector.load %arg7[%c0_23, %c16] : memref<8x32xf32, #tpu.memory_space<vmem>>, vector<8x8xf32>
    tpu.vector_store %arg7[%c0_23, %c16], %54 {strides = array<i32>} : memref<8x32xf32, #tpu.memory_space<vmem>>, vector<8x8xf32>,
    %56 = vector.extract_strided_slice %3 {offsets = [0, 24], sizes = [8, 8], strides = [1, 1]} : vector<8x32xf32> to vector<8x8xf32>
    %57 = vector.extract_strided_slice %5 {offsets = [0, 24], sizes = [8, 8], strides = [1, 1]} : vector<8x32xf32> to vector<8x8xf32>
    %cst_24 = arith.constant dense<0.000000e+00> : vector<8x8xf32>
    %58 = tpu.matmul %56, %57, %cst_24 {dimension_numbers = #tpu.dot_dimension_numbers<[1], [1], [0], [0], [0, 0, 1, 0], [], []>} : vector<8x8xf32>, vector<8x8xf32>, vector<8x8xf32> -> vector<8x8xf32>
    %cst_25 = arith.constant dense<0xFF800000> : vector<8xf32>
    %59 = vector.multi_reduction <maximumf>, %58, %cst_25 [1] : vector<8x8xf32> to vector<8xf32>
    %60 = vector.shape_cast %59 : vector<8xf32> to vector<8x1xf32>
    %61 = vector.broadcast %60 : vector<8x1xf32> to vector<8x8xf32>
    %62 = arith.subf %58, %61 : vector<8x8xf32>
    %63 = math.exp %62 : vector<8x8xf32>
    %cst_26 = arith.constant dense<0.000000e+00> : vector<8xf32>
    %64 = vector.multi_reduction <add>, %63, %cst_26 [1] : vector<8x8xf32> to vector<8xf32>
    %65 = vector.shape_cast %64 : vector<8xf32> to vector<8x1xf32>
    %66 = tpu.reciprocal %65 {approx = true} : vector<8x1xf32> -> vector<8x1xf32>
    %67 = vector.broadcast %66 : vector<8x1xf32> to vector<8x8xf32>
    %68 = arith.mulf %63, %67 : vector<8x8xf32>
    %69 = vector.extract_strided_slice %7 {offsets = [0, 24], sizes = [8, 8], strides = [1, 1]} : vector<8x32xf32> to vector<8x8xf32>
    %cst_27 = arith.constant dense<0.000000e+00> : vector<8x8xf32>
    %70 = tpu.matmul %68, %69, %cst_27 {dimension_numbers = #tpu.dot_dimension_numbers<[1], [0], [0], [1], [0, 0, 1, 1], [], []>} : vector<8x8xf32>, vector<8x8xf32>, vector<8x8xf32> -> vector<8x8xf32>
    %c0_28 = arith.constant 0 : index
    %c24 = arith.constant 24 : index
    %71 = vector.load %arg7[%c0_28, %c24] : memref<8x32xf32, #tpu.memory_space<vmem>>, vector<8x8xf32>
    tpu.vector_store %arg7[%c0_28, %c24], %70 {strides = array<i32>} : memref<8x32xf32, #tpu.memory_space<vmem>>, vector<8x8xf32>,
    %c0_29 = arith.constant 0 : index
    %c0_30 = arith.constant 0 : index
    %72 = vector.load %arg7[%c0_29, %c0_30] : memref<8x32xf32, #tpu.memory_space<vmem>>, vector<8x32xf32>
    %c0_31 = arith.constant 0 : index
    %c0_32 = arith.constant 0 : index
    %73 = vector.load %arg4[%c0_31, %c0_32] : memref<32x32xf32, #tpu.memory_space<vmem>>, vector<32x32xf32>
    %cst_33 = arith.constant dense<0.000000e+00> : vector<8x32xf32>
    %74 = tpu.matmul %72, %73, %cst_33 {dimension_numbers = #tpu.dot_dimension_numbers<[1], [1], [0], [0], [0, 0, 1, 0], [], []>} : vector<8x32xf32>, vector<32x32xf32>, vector<8x32xf32> -> vector<8x32xf32>
    %c0_34 = arith.constant 0 : index
    %c0_35 = arith.constant 0 : index
    %75 = vector.load %arg5[%c0_34, %c0_35] : memref<1x32xf32, #tpu.memory_space<vmem>>, vector<1x32xf32>
    %76 = vector.broadcast %75 : vector<1x32xf32> to vector<8x32xf32>
    %77 = arith.addf %74, %76 : vector<8x32xf32>
    %c0_36 = arith.constant 0 : index
    %c0_37 = arith.constant 0 : index
    %c0_38 = arith.constant 0 : index
    %78 = vector.load %arg6[%c0_36, %c0_37, %c0_38] : memref<1x8x32xf32, #tpu.memory_space<vmem>>, vector<1x8x32xf32>
    %79 = vector.shape_cast %78 : vector<1x8x32xf32> to vector<8x32xf32>
    %80 = vector.shape_cast %77 : vector<8x32xf32> to vector<1x8x32xf32>
    tpu.vector_store %arg6[%c0_36, %c0_37, %c0_38], %80 {strides = array<i32>} : memref<1x8x32xf32, #tpu.memory_space<vmem>>, vector<1x8x32xf32>,
    return
  }
  func.func @transform_0(%arg0: i32) -> (i32, i32, i32) {
    %c0_i32 = arith.constant 0 : i32
    %c0_i32_0 = arith.constant 0 : i32
    %c0_i32_1 = arith.constant 0 : i32
    return %arg0, %c0_i32, %c0_i32_0 : i32, i32, i32
  }
  func.func @transform_1(%arg0: i32) -> (i32, i32, i32) {
    %c0_i32 = arith.constant 0 : i32
    %c0_i32_0 = arith.constant 0 : i32
    %c0_i32_1 = arith.constant 0 : i32
    return %arg0, %c0_i32, %c0_i32_0 : i32, i32, i32
  }
  func.func @transform_2(%arg0: i32) -> (i32, i32, i32) {
    %c0_i32 = arith.constant 0 : i32
    %c0_i32_0 = arith.constant 0 : i32
    %c0_i32_1 = arith.constant 0 : i32
    return %arg0, %c0_i32, %c0_i32_0 : i32, i32, i32
  }
  func.func @transform_3(%arg0: i32) -> (i32, i32) {
    %c0_i32 = arith.constant 0 : i32
    %c0_i32_0 = arith.constant 0 : i32
    %c0_i32_1 = arith.constant 0 : i32
    return %c0_i32, %c0_i32_0 : i32, i32
  }
  func.func @transform_4(%arg0: i32) -> (i32, i32) {
    %c0_i32 = arith.constant 0 : i32
    %c0_i32_0 = arith.constant 0 : i32
    %c0_i32_1 = arith.constant 0 : i32
    return %c0_i32, %c0_i32_0 : i32, i32
  }
  func.func @transform_5(%arg0: i32) -> (i32, i32, i32) {
    %c0_i32 = arith.constant 0 : i32
    %c0_i32_0 = arith.constant 0 : i32
    %c0_i32_1 = arith.constant 0 : i32
    return %arg0, %c0_i32, %c0_i32_0 : i32, i32, i32
  }
}

</mosaic_0001>

<llo_original>
// kernel: multihead_ca_forward.2
$region0: #{multihead_ca_forward.2}
  #allocation0 [shape = 'u32[]', space=smem, size = 0x4, offset = 0x4, fixed_abs, tag = 'smem constant byte address 0x4 - core index']
  #allocation1 [shape = 'u32[144,128]{1,0:T(1,128)}', space=vmem, size = 0x12000, scoped, tag = 'internal scratch']
  %s0 = inlined_call_operand.vmem [shape: f32[16,32], index: 0, kind: input, shape index: {}]
  %s1 = inlined_call_operand.vmem [shape: f32[96,32], index: 1, kind: input, shape index: {}]
  %s2 = inlined_call_operand.vmem [shape: f32[1,96], index: 2, kind: input, shape index: {}]
  %s3 = inlined_call_operand.vmem [shape: f32[16,32], index: 3, kind: output, shape index: {0}]
  %s4 = inlined_call_operand.vmem [shape: f32[16,32], index: 4, kind: output, shape index: {1}]
  %s5 = inlined_call_operand.vmem [shape: f32[16,32], index: 5, kind: output, shape index: {2}]
  %6 = xla_tuple %s3, %s4, %s5
  %s7 = sld [smem:[#allocation0]]
  $region38: #{multihead_ca_forward.2} parent=0
    _
  %s9 = ssub.s32 1, %s7
  %s10 = scalar_select 0, %s9, %s7
  // Predicated region
  $region2: #{multihead_ca_forward.2} parent=0 // pred_check
    _
  $region3: #{multihead_ca_forward.2} parent=0 // pred_check_branch
    %12 = sbr.rel (0) target = $region5
  $region4: #{multihead_ca_forward.2} parent=0 // pred_region
    _
  $region5: #{multihead_ca_forward.2} parent=0 // pred_fallthru
    _
  // Predicated region
  $region6: #{multihead_ca_forward.2} parent=0 // pred_check
    _
  $region7: #{multihead_ca_forward.2} parent=0 // pred_check_branch
    %14 = sbr.rel (0) target = $region9
  $region8: #{multihead_ca_forward.2} parent=0 // pred_region
    _
  $region9: #{multihead_ca_forward.2} parent=0 // pred_fallthru
    _
  // Predicated region
  $region10: #{multihead_ca_forward.2} parent=0 // pred_check
    _
  $region11: #{multihead_ca_forward.2} parent=0 // pred_check_branch
    %16 = sbr.rel (0) target = $region13
  $region12: #{multihead_ca_forward.2} parent=0 // pred_region
    _
  $region13: #{multihead_ca_forward.2} parent=0 // pred_fallthru
    _
  %v17 = vld [vmem:[%s0] sm:$0xff]
  %v18 = vld [vmem:[%s0 + $0x8] sm:$0xff]
  %v19 = vld [vmem:[%s1] sm:$0xff]
  %v20 = vld [vmem:[%s1 + $0x8] sm:$0xff]
  %v21 = vld [vmem:[%s1 + $0x10] sm:$0xff]
  %v22 = vld [vmem:[%s1 + $0x18] sm:$0xff]
  %v23 = vld [vmem:[%s1 + $0x20] sm:$0xff]
  %v24 = vld [vmem:[%s1 + $0x28] sm:$0xff]
  %v25 = vld [vmem:[%s1 + $0x30] sm:$0xff]
  %v26 = vld [vmem:[%s1 + $0x38] sm:$0xff]
  %v27 = vld [vmem:[%s1 + $0x40] sm:$0xff]
  %v28 = vld [vmem:[%s1 + $0x48] sm:$0xff]
  %v29 = vld [vmem:[%s1 + $0x50] sm:$0xff]
  %v30 = vld [vmem:[%s1 + $0x58] sm:$0xff]
  %v31 = vld [vmem:[%s2] sm:$0x1]
  %v33 = vlaneseq
  %v34 = vshrl.u32 %v33, 7
  %v35 = vsub.s32 0, %v34
  %v36 = vrot.slane %v31, %v35
  %vm38 = vcmask 261120
  %v40 = vsel %vm38, %v17, 0
  %v43 = vsel %vm38, %v18, 0
  %v46 = vsel %vm38, %v19, 0
  %v49 = vsel %vm38, %v20, 0
  %v52 = vsel %vm38, %v21, 0
  %v55 = vsel %vm38, %v22, 0
  %v58 = vsel %vm38, %v23, 0
  %v61 = vsel %vm38, %v24, 0
  %v64 = vsel %vm38, %v25, 0
  %v67 = vsel %vm38, %v26, 0
  %v70 = vsel %vm38, %v27, 0
  %v73 = vsel %vm38, %v28, 0
  %v76 = vsel %vm38, %v29, 0
  %v79 = vsel %vm38, %v30, 0
  %81 = vmatprep.subr.mxu0 0.0
  %82 = vmatpush1.xpose.msra.mxu0 0.0
  %83 = vmatprep.subr.mxu0 0.0
  %84 = vmatpush1.xpose.msra.mxu0 0.0
  %85 = vmatprep.subr.mxu0 0.0
  %86 = vmatpush1.xpose.msra.mxu0 0.0
  %87 = vmatprep.subr.mxu0 0.0
  %88 = vmatpush1.xpose.msra.mxu0 0.0
  %89 = vmatprep.subr.mxu0 0.0
  %90 = vmatpush1.xpose.msra.mxu0 %v79
  %91 = vmatprep.subr.mxu0 0.0
  %92 = vmatpush1.xpose.msra.mxu0 %v76
  %93 = vmatprep.subr.mxu0 0.0
  %94 = vmatpush1.xpose.msra.mxu0 %v73
  %95 = vmatprep.subr.mxu0 0.0
  %96 = vmatpush1.xpose.msra.mxu0 %v70
  %97 = vmatprep.subr.mxu0 0.0
  %98 = vmatpush1.xpose.msra.mxu0 %v67
  %99 = vmatprep.subr.mxu0 0.0
  %100 = vmatpush1.xpose.msra.mxu0 %v64
  %101 = vmatprep.subr.mxu0 0.0
  %102 = vmatpush1.xpose.msra.mxu0 %v61
  %103 = vmatprep.subr.mxu0 0.0
  %104 = vmatpush1.xpose.msra.mxu0 %v58
  %105 = vmatprep.subr.mxu0 0.0
  %106 = vmatpush1.xpose.msra.mxu0 %v55
  %107 = vmatprep.subr.mxu0 0.0
  %108 = vmatpush1.xpose.msra.mxu0 %v52
  %109 = vmatprep.subr.mxu0 0.0
  %110 = vmatpush1.xpose.msra.mxu0 %v49
  %111 = vmatprep.subr.mxu0 0.0
  %112 = vmatpush1.xpose.msra.mxu0 %v46
  %113 = vmatprep.subr.mxu0 0.0
  %114 = vmatpush2.xpose.msra.mxu0 0.0
  %115 = vmatprep.subr.mxu0 0.0
  %116 = vmatpush2.xpose.msra.mxu0 0.0
  %117 = vmatprep.subr.mxu0 0.0
  %118 = vmatpush2.xpose.msra.mxu0 0.0
  %119 = vmatprep.subr.mxu0 0.0
  %120 = vmatpush2.xpose.msra.mxu0 0.0
  %121 = vmatprep.subr.mxu0 0.0
  %122 = vmatpush2.xpose.msra.mxu0 0.0
  %123 = vmatprep.subr.mxu0 0.0
  %124 = vmatpush2.xpose.msra.mxu0 0.0
  %125 = vmatprep.subr.mxu0 0.0
  %126 = vmatpush2.xpose.msra.mxu0 0.0
  %127 = vmatprep.subr.mxu0 0.0
  %128 = vmatpush2.xpose.msra.mxu0 0.0
  %129 = vmatprep.subr.mxu0 0.0
  %130 = vmatpush2.xpose.msra.mxu0 0.0
  %131 = vmatprep.subr.mxu0 0.0
  %132 = vmatpush2.xpose.msra.mxu0 0.0
  %133 = vmatprep.subr.mxu0 0.0
  %134 = vmatpush2.xpose.msra.mxu0 0.0
  %135 = vmatprep.subr.mxu0 0.0
  %136 = vmatpush2.xpose.msra.mxu0 0.0
  %137 = vmatprep.subr.mxu0 0.0
  %138 = vmatpush2.xpose.msra.mxu0 0.0
  %139 = vmatprep.subr.mxu0 0.0
  %140 = vmatpush2.xpose.msra.mxu0 0.0
  %141 = vmatprep.subr.mxu0 0.0
  %142 = vmatpush2.xpose.msra.mxu0 0.0
  %143 = vmatprep.subr.mxu0 0.0
  %144 = vmatpush2.xpose.msra.mxu0 0.0
  %145 = vmatprep.mubr.f32.mxu0 0.0
  %146 = vmatmul.mubr.f32.gmra.mxu0 %v40
  %v147 = vpop.f32.mrf.mxu0
  %v148 = vadd.f32 %v36, %v147
  %v149 = vpop.f32.mrf.mxu0
  %150 = vmatprep.mubr.f32.mxu0 0.0
  %151 = vmatmul.mubr.f32.gmra.mxu0 %v43
  %v152 = vpop.f32.mrf.mxu0
  %v153 = vadd.f32 %v36, %v152
  %v154 = vpop.f32.mrf.mxu0
  %155 = vdwg.mxu0
  %156 = vst.msk [vmem:[%s3] sm:$0xff] %vm38, %v148
  %157 = vst.msk [vmem:[%s3 + $0x8] sm:$0xff] %vm38, %v153
  %160 = vrot.lane.b32.xlu0 %v148, 96
  %v161 = vpop.permute.xlu0 %160
  %162 = vrot.lane.b32.xlu0 %v153, 96
  %v163 = vpop.permute.xlu0 %162
  %166 = vst.msk [vmem:[%s4] sm:$0xff] %vm38, %v161
  %167 = vst.msk [vmem:[%s4 + $0x8] sm:$0xff] %vm38, %v163
  %168 = vrot.lane.b32.xlu0 %v148, 64
  %v169 = vpop.permute.xlu0 %168
  %170 = vrot.lane.b32.xlu0 %v153, 64
  %v171 = vpop.permute.xlu0 %170
  %174 = vst.msk [vmem:[%s5] sm:$0xff] %vm38, %v169
  %175 = vst.msk [vmem:[%s5 + $0x8] sm:$0xff] %vm38, %v171
  // Predicated region
  $region14: #{multihead_ca_forward.2} parent=0 // pred_check
    _
  $region15: #{multihead_ca_forward.2} parent=0 // pred_check_branch
    %177 = sbr.rel (0) target = $region17
  $region16: #{multihead_ca_forward.2} parent=0 // pred_region
    _
  $region17: #{multihead_ca_forward.2} parent=0 // pred_fallthru
    _
  // Predicated region
  $region18: #{multihead_ca_forward.2} parent=0 // pred_check
    _
  $region19: #{multihead_ca_forward.2} parent=0 // pred_check_branch
    %179 = sbr.rel (0) target = $region21
  $region20: #{multihead_ca_forward.2} parent=0 // pred_region
    _
  $region21: #{multihead_ca_forward.2} parent=0 // pred_fallthru
    _
  // Predicated region
  $region22: #{multihead_ca_forward.2} parent=0 // pred_check
    _
  $region23: #{multihead_ca_forward.2} parent=0 // pred_check_branch
    %181 = sbr.rel (0) target = $region25
  $region24: #{multihead_ca_forward.2} parent=0 // pred_region
    _
  $region25: #{multihead_ca_forward.2} parent=0 // pred_fallthru
    _
  // Predicated region
  $region26: #{multihead_ca_forward.2} parent=0 // pred_check
    _
  $region27: #{multihead_ca_forward.2} parent=0 // pred_check_branch
    %183 = sbr.rel (0) target = $region29
  $region28: #{multihead_ca_forward.2} parent=0 // pred_region
    _
  $region29: #{multihead_ca_forward.2} parent=0 // pred_fallthru
    _
  // Predicated region
  $region30: #{multihead_ca_forward.2} parent=0 // pred_check
    _
  $region31: #{multihead_ca_forward.2} parent=0 // pred_check_branch
    %185 = sbr.rel (0) target = $region33
  $region32: #{multihead_ca_forward.2} parent=0 // pred_region
    _
  $region33: #{multihead_ca_forward.2} parent=0 // pred_fallthru
    _
  // Predicated region
  $region34: #{multihead_ca_forward.2} parent=0 // pred_check
    _
  $region35: #{multihead_ca_forward.2} parent=0 // pred_check_branch
    %187 = sbr.rel (0) target = $region37
  $region36: #{multihead_ca_forward.2} parent=0 // pred_region
    _
  $region37: #{multihead_ca_forward.2} parent=0 // pred_fallthru
    _

// kernel: multihead_ca_forward.3
$region0: #{multihead_ca_forward.3}
  #allocation0 [shape = 'u32[]', space=smem, size = 0x4, offset = 0x4, fixed_abs, tag = 'smem constant byte address 0x4 - core index']
  #allocation1 [shape = 'u32[144,128]{1,0:T(1,128)}', space=vmem, size = 0x12000, scoped, tag = 'internal scratch']
  #allocation2 [shape = 'f32[8,32]{1,0:T(8,128)}', space=vmem, size = 0x1000, scoped, tag = 'scratch operand']
  %s0 = inlined_call_operand.vmem [shape: f32[2,8,32], index: 0, kind: input, shape index: {}]
  %s1 = inlined_call_operand.vmem [shape: f32[2,8,32], index: 1, kind: input, shape index: {}]
  %s2 = inlined_call_operand.vmem [shape: f32[2,8,32], index: 2, kind: input, shape index: {}]
  %s3 = inlined_call_operand.vmem [shape: f32[32,32], index: 3, kind: input, shape index: {}]
  %s4 = inlined_call_operand.vmem [shape: f32[1,32], index: 4, kind: input, shape index: {}]
  %s5 = inlined_call_operand.vmem [shape: f32[2,8,32], index: 5, kind: output, shape index: {}]
  %s6 = sld [smem:[#allocation0]]
  $region53: #{multihead_ca_forward.3} parent=0
    _
  %s8 = ssub.s32 1, %s6
  %s9 = scalar_select 0, %s8, %s6
  loop: start=0, step=1, limit=4
  $region2: #{multihead_ca_forward.3} parent=0 // loop_pre_header
    _
  $region3: #{multihead_ca_forward.3} parent=0 // loop_header
    %s11 = sphi 0, %s15
    %p12 = scmp.ge.s32.totalorder %s11, 4
    %s21 = sphi 0, %s23
    %s24 = sphi 0, %s21
    %s25 = sphi 0, %s24
    %s41 = sphi 0, %s25
    %s47 = sphi 0, %s49
    %s50 = sphi 0, %s47
    %s51 = sphi 0, %s50
    %s67 = sphi 0, %s51
    %s73 = sphi 0, %s75
    %s76 = sphi 0, %s73
    %s77 = sphi 0, %s76
    %s93 = sphi 0, %s77
    %s97 = sphi 0, %s97
    %s99 = sphi 0, %s97
    %s100 = sphi 0, %s99
    %s114 = sphi 0, %s100
    %s118 = sphi 0, %s118
    %s120 = sphi 0, %s118
    %s121 = sphi 0, %s120
    %s135 = sphi 0, %s121
    %s141 = sphi 0, %s143
    %s144 = sphi 0, %s141
    %s145 = sphi 0, %s144
    %s161 = sphi 0, %s145
  $region4: #{multihead_ca_forward.3} parent=0 // loop_header_branch
    %14 = sbr.rel (%p12) target = $region8
  $region5: #{multihead_ca_forward.3} parent=0 // loop_body
    %s16 = ssub.s32 %s11, 1
    %s17 = ssub.s32 %s11, 2
    %s18 = sadd.s32 %s11, 1
    %s19 = ssub.s32 %s11, %s18
    %p20 = scmp.eq.s32.totalorder %s19, 0
    %s22 = sadd.s32 %s21, 1
    %s23 = scalar_select %p20, %s21, %s22
    %p26 = pneg %p20
    %p27 = scmp.eq.s32.totalorder %s11, 1
    %p28 = por %p26, %p27
    %p29 = scmp.ne.s32.totalorder %s21, %s24
    %p30 = scmp.eq.s32.totalorder %s11, 0
    %p31 = por %p29, %p30
    %p32 = scmp.ne.s32.totalorder %s21, %s24
    %p33 = scmp.eq.s32.totalorder %s16, 1
    %p34 = por %p32, %p33
    %p35 = scmp.ne.s32.totalorder %s24, %s25
    %p36 = scmp.eq.s32.totalorder %s16, 0
    %p37 = por %p35, %p36
    %p38 = scmp.ne.s32.totalorder %s24, %s25
    %p39 = scmp.eq.s32.totalorder %s17, 1
    %p40 = por %p38, %p39
    %p42 = scmp.ne.s32.totalorder %s25, %s41
    %p43 = scmp.eq.s32.totalorder %s17, 0
    %p44 = por %p42, %p43
    %s45 = ssub.s32 %s11, %s18
    %p46 = scmp.eq.s32.totalorder %s45, 0
    %s48 = sadd.s32 %s47, 1
    %s49 = scalar_select %p46, %s47, %s48
    %p52 = pneg %p46
    %p53 = scmp.eq.s32.totalorder %s11, 1
    %p54 = por %p52, %p53
    %p55 = scmp.ne.s32.totalorder %s47, %s50
    %p56 = scmp.eq.s32.totalorder %s11, 0
    %p57 = por %p55, %p56
    %p58 = scmp.ne.s32.totalorder %s47, %s50
    %p59 = scmp.eq.s32.totalorder %s16, 1
    %p60 = por %p58, %p59
    %p61 = scmp.ne.s32.totalorder %s50, %s51
    %p62 = scmp.eq.s32.totalorder %s16, 0
    %p63 = por %p61, %p62
    %p64 = scmp.ne.s32.totalorder %s50, %s51
    %p65 = scmp.eq.s32.totalorder %s17, 1
    %p66 = por %p64, %p65
    %p68 = scmp.ne.s32.totalorder %s51, %s67
    %p69 = scmp.eq.s32.totalorder %s17, 0
    %p70 = por %p68, %p69
    %s71 = ssub.s32 %s11, %s18
    %p72 = scmp.eq.s32.totalorder %s71, 0
    %s74 = sadd.s32 %s73, 1
    %s75 = scalar_select %p72, %s73, %s74
    %p78 = pneg %p72
    %p79 = scmp.eq.s32.totalorder %s11, 1
    %p80 = por %p78, %p79
    %p81 = scmp.ne.s32.totalorder %s73, %s76
    %p82 = scmp.eq.s32.totalorder %s11, 0
    %p83 = por %p81, %p82
    %p84 = scmp.ne.s32.totalorder %s73, %s76
    %p85 = scmp.eq.s32.totalorder %s16, 1
    %p86 = por %p84, %p85
    %p87 = scmp.ne.s32.totalorder %s76, %s77
    %p88 = scmp.eq.s32.totalorder %s16, 0
    %p89 = por %p87, %p88
    %p90 = scmp.ne.s32.totalorder %s76, %s77
    %p91 = scmp.eq.s32.totalorder %s17, 1
    %p92 = por %p90, %p91
    %p94 = scmp.ne.s32.totalorder %s77, %s93
    %p95 = scmp.eq.s32.totalorder %s17, 0
    %p96 = por %p94, %p95
    %s98 = sadd.s32 %s97, 1
    %p101 = scmp.eq.s32.totalorder %s11, 1
    %p102 = scmp.ne.s32.totalorder %s97, %s99
    %p103 = scmp.eq.s32.totalorder %s11, 0
    %p104 = por %p102, %p103
    %p105 = scmp.ne.s32.totalorder %s97, %s99
    %p106 = scmp.eq.s32.totalorder %s16, 1
    %p107 = por %p105, %p106
    %p108 = scmp.ne.s32.totalorder %s99, %s100
    %p109 = scmp.eq.s32.totalorder %s16, 0
    %p110 = por %p108, %p109
    %p111 = scmp.ne.s32.totalorder %s99, %s100
    %p112 = scmp.eq.s32.totalorder %s17, 1
    %p113 = por %p111, %p112
    %p115 = scmp.ne.s32.totalorder %s100, %s114
    %p116 = scmp.eq.s32.totalorder %s17, 0
    %p117 = por %p115, %p116
    %s119 = sadd.s32 %s118, 1
    %p122 = scmp.eq.s32.totalorder %s11, 1
    %p123 = scmp.ne.s32.totalorder %s118, %s120
    %p124 = scmp.eq.s32.totalorder %s11, 0
    %p125 = por %p123, %p124
    %p126 = scmp.ne.s32.totalorder %s118, %s120
    %p127 = scmp.eq.s32.totalorder %s16, 1
    %p128 = por %p126, %p127
    %p129 = scmp.ne.s32.totalorder %s120, %s121
    %p130 = scmp.eq.s32.totalorder %s16, 0
    %p131 = por %p129, %p130
    %p132 = scmp.ne.s32.totalorder %s120, %s121
    %p133 = scmp.eq.s32.totalorder %s17, 1
    %p134 = por %p132, %p133
    %p136 = scmp.ne.s32.totalorder %s121, %s135
    %p137 = scmp.eq.s32.totalorder %s17, 0
    %p138 = por %p136, %p137
    %s139 = ssub.s32 %s11, %s18
    %p140 = scmp.eq.s32.totalorder %s139, 0
    %s142 = sadd.s32 %s141, 1
    %s143 = scalar_select %p140, %s141, %s142
    %p146 = pneg %p140
    %p147 = scmp.eq.s32.totalorder %s11, 1
    %p148 = por %p146, %p147
    %p149 = scmp.ne.s32.totalorder %s141, %s144
    %p150 = scmp.eq.s32.totalorder %s11, 0
    %p151 = por %p149, %p150
    %p152 = scmp.ne.s32.totalorder %s141, %s144
    %p153 = scmp.eq.s32.totalorder %s16, 1
    %p154 = por %p152, %p153
    %p155 = scmp.ne.s32.totalorder %s144, %s145
    %p156 = scmp.eq.s32.totalorder %s16, 0
    %p157 = por %p155, %p156
    %p158 = scmp.ne.s32.totalorder %s144, %s145
    %p159 = scmp.eq.s32.totalorder %s17, 1
    %p160 = por %p158, %p159
    %p162 = scmp.ne.s32.totalorder %s145, %s161
    %p163 = scmp.eq.s32.totalorder %s17, 0
    %p164 = por %p162, %p163
    %p165 = scmp.le.s32.totalorder 1, %s11
    %p166 = scmp.lt.s32.totalorder %s11, 3
    %p167 = pnand %p165, %p166
    %p168 = pneg %p167
    // Predicated region
    $region9: #{multihead_ca_forward.3} parent=5 // pred_check
      _
    $region10: #{multihead_ca_forward.3} parent=5 // pred_check_branch
      %170 = sbr.rel (%p167) target = $region12
    $region11: #{multihead_ca_forward.3} parent=5 // pred_region
      %s171 = ssub.s32 %s11, 1
      // Predicated region
      $region13: #{multihead_ca_forward.3} parent=11 // pred_check
        %p172 = pneg %p110
      $region14: #{multihead_ca_forward.3} parent=11 // pred_check_branch
        %174 = sbr.rel (%p172) target = $region16
      $region15: #{multihead_ca_forward.3} parent=11 // pred_region
        _
      $region16: #{multihead_ca_forward.3} parent=11 // pred_fallthru
        _
      // Predicated region
      $region17: #{multihead_ca_forward.3} parent=11 // pred_check
        %p175 = pneg %p131
      $region18: #{multihead_ca_forward.3} parent=11 // pred_check_branch
        %177 = sbr.rel (%p175) target = $region20
      $region19: #{multihead_ca_forward.3} parent=11 // pred_region
        _
      $region20: #{multihead_ca_forward.3} parent=11 // pred_fallthru
        _
    $region12: #{multihead_ca_forward.3} parent=5 // pred_fallthru
      _
    %p178 = scmp.lt.s32.totalorder %s11, 2
    // Predicated region
    $region21: #{multihead_ca_forward.3} parent=5 // pred_check
      %p179 = pneg %p178
    $region22: #{multihead_ca_forward.3} parent=5 // pred_check_branch
      %181 = sbr.rel (%p179) target = $region24
    $region23: #{multihead_ca_forward.3} parent=5 // pred_region
      // Predicated region
      $region25: #{multihead_ca_forward.3} parent=23 // pred_check
        %p182 = pneg %p31
      $region26: #{multihead_ca_forward.3} parent=23 // pred_check_branch
        %184 = sbr.rel (%p182) target = $region28
      $region27: #{multihead_ca_forward.3} parent=23 // pred_region
        %p185 = scmp.lt.s32.totalorder %s11, 1
        %s186 = scalar_select %p185, %s11, 1
        %s187 = smul.addr %s186, 8
        %s188 = scalar_lea.vmem %s0, %s187
      $region28: #{multihead_ca_forward.3} parent=23 // pred_fallthru
        _
      // Predicated region
      $region29: #{multihead_ca_forward.3} parent=23 // pred_check
        %p189 = pneg %p57
      $region30: #{multihead_ca_forward.3} parent=23 // pred_check_branch
        %191 = sbr.rel (%p189) target = $region32
      $region31: #{multihead_ca_forward.3} parent=23 // pred_region
        %p192 = scmp.lt.s32.totalorder %s11, 1
        %s193 = scalar_select %p192, %s11, 1
        %s194 = smul.addr %s193, 8
        %s195 = scalar_lea.vmem %s1, %s194
      $region32: #{multihead_ca_forward.3} parent=23 // pred_fallthru
        _
      // Predicated region
      $region33: #{multihead_ca_forward.3} parent=23 // pred_check
        %p196 = pneg %p83
      $region34: #{multihead_ca_forward.3} parent=23 // pred_check_branch
        %198 = sbr.rel (%p196) target = $region36
      $region35: #{multihead_ca_forward.3} parent=23 // pred_region
        %p199 = scmp.lt.s32.totalorder %s11, 1
        %s200 = scalar_select %p199, %s11, 1
        %s201 = smul.addr %s200, 8
        %s202 = scalar_lea.vmem %s2, %s201
      $region36: #{multihead_ca_forward.3} parent=23 // pred_fallthru
        _
    $region24: #{multihead_ca_forward.3} parent=5 // pred_fallthru
      _
    %p203 = scmp.le.s32.totalorder 1, %s11
    %p204 = scmp.lt.s32.totalorder %s11, 3
    %p205 = pnand %p203, %p204
    %p206 = pneg %p205
    // Predicated region
    $region37: #{multihead_ca_forward.3} parent=5 // pred_check
      _
    $region38: #{multihead_ca_forward.3} parent=5 // pred_check_branch
      %208 = sbr.rel (%p205) target = $region40
    $region39: #{multihead_ca_forward.3} parent=5 // pred_region
      %s209 = ssub.s32 %s11, 1
      %p210 = scmp.lt.s32.totalorder %s16, 1
      %s211 = scalar_select %p210, %s16, 1
      %s212 = smul.addr %s211, 8
      %s213 = scalar_lea.vmem %s0, %s212
      %p214 = pneg %p37
      %p215 = pneg %p34
      %p216 = scmp.lt.s32.totalorder %s16, 1
      %s217 = scalar_select %p216, %s16, 1
      %s218 = smul.addr %s217, 8
      %s219 = scalar_lea.vmem %s1, %s218
      %p220 = pneg %p63
      %p221 = pneg %p60
      %p222 = scmp.lt.s32.totalorder %s16, 1
      %s223 = scalar_select %p222, %s16, 1
      %s224 = smul.addr %s223, 8
      %s225 = scalar_lea.vmem %s2, %s224
      %p226 = pneg %p89
      %p227 = pneg %p86
      %p228 = pneg %p110
      %p229 = pneg %p107
      %p230 = pneg %p131
      %p231 = pneg %p128
      %p232 = pneg %p157
      %p233 = pneg %p154
      %p234 = scmp.lt.s32.totalorder %s16, 1
      %s235 = scalar_select %p234, %s16, 1
      %s236 = smul.addr %s235, 8
      %s237 = scalar_lea.vmem %s5, %s236
      %p238 = scmp.lt.s32.totalorder %s16, 1
      %s239 = scalar_select %p238, %s16, 1
      %s240 = smul.addr %s239, 8
      %s241 = scalar_lea.vmem %s0, %s240
      %p242 = scmp.lt.s32.totalorder %s16, 1
      %s243 = scalar_select %p242, %s16, 1
      %s244 = smul.addr %s243, 8
      %s245 = scalar_lea.vmem %s1, %s244
      %p246 = scmp.lt.s32.totalorder %s16, 1
      %s247 = scalar_select %p246, %s16, 1
      %s248 = smul.addr %s247, 8
      %s249 = scalar_lea.vmem %s2, %s248
      %p250 = scmp.lt.s32.totalorder %s16, 1
      %s251 = scalar_select %p250, %s16, 1
      %s252 = smul.addr %s251, 8
      %s253 = scalar_lea.vmem %s5, %s252
      %v254 = vld [vmem:[%s241] sm:$0xff]
      %v255 = vmul.f32 %v254, 0.35355338
      %v256 = vld [vmem:[%s245] sm:$0xff]
      %v257 = vld [vmem:[%s249] sm:$0xff]
      %vm258 = vcmask 64512
      %v260 = vsel %vm258, %v255, 0
      %v263 = vsel %vm258, %v256, 0
      %265 = vmatprep.subr.mxu0 0.0
      %266 = vmatpush1.xpose.msra.mxu0 0.0
      %267 = vmatprep.subr.mxu0 0.0
      %268 = vmatpush1.xpose.msra.mxu0 0.0
      %269 = vmatprep.subr.mxu0 0.0
      %270 = vmatpush1.xpose.msra.mxu0 0.0
      %271 = vmatprep.subr.mxu0 0.0
      %272 = vmatpush1.xpose.msra.mxu0 0.0
      %273 = vmatprep.subr.mxu0 0.0
      %274 = vmatpush1.xpose.msra.mxu0 0.0
      %275 = vmatprep.subr.mxu0 0.0
      %276 = vmatpush1.xpose.msra.mxu0 0.0
      %277 = vmatprep.subr.mxu0 0.0
      %278 = vmatpush1.xpose.msra.mxu0 0.0
      %279 = vmatprep.subr.mxu0 0.0
      %280 = vmatpush1.xpose.msra.mxu0 0.0
      %281 = vmatprep.subr.mxu0 0.0
      %282 = vmatpush1.xpose.msra.mxu0 0.0
      %283 = vmatprep.subr.mxu0 0.0
      %284 = vmatpush1.xpose.msra.mxu0 0.0
      %285 = vmatprep.subr.mxu0 0.0
      %286 = vmatpush1.xpose.msra.mxu0 0.0
      %287 = vmatprep.subr.mxu0 0.0
      %288 = vmatpush1.xpose.msra.mxu0 0.0
      %289 = vmatprep.subr.mxu0 0.0
      %290 = vmatpush1.xpose.msra.mxu0 0.0
      %291 = vmatprep.subr.mxu0 0.0
      %292 = vmatpush1.xpose.msra.mxu0 0.0
      %293 = vmatprep.subr.mxu0 0.0
      %294 = vmatpush1.xpose.msra.mxu0 0.0
      %295 = vmatprep.subr.mxu0 0.0
      %296 = vmatpush1.xpose.msra.mxu0 %v263
      %297 = vmatprep.subr.mxu0 0.0
      %298 = vmatpush2.xpose.msra.mxu0 0.0
      %299 = vmatprep.subr.mxu0 0.0
      %300 = vmatpush2.xpose.msra.mxu0 0.0
      %301 = vmatprep.subr.mxu0 0.0
      %302 = vmatpush2.xpose.msra.mxu0 0.0
      %303 = vmatprep.subr.mxu0 0.0
      %304 = vmatpush2.xpose.msra.mxu0 0.0
      %305 = vmatprep.subr.mxu0 0.0
      %306 = vmatpush2.xpose.msra.mxu0 0.0
      %307 = vmatprep.subr.mxu0 0.0
      %308 = vmatpush2.xpose.msra.mxu0 0.0
      %309 = vmatprep.subr.mxu0 0.0
      %310 = vmatpush2.xpose.msra.mxu0 0.0
      %311 = vmatprep.subr.mxu0 0.0
      %312 = vmatpush2.xpose.msra.mxu0 0.0
      %313 = vmatprep.subr.mxu0 0.0
      %314 = vmatpush2.xpose.msra.mxu0 0.0
      %315 = vmatprep.subr.mxu0 0.0
      %316 = vmatpush2.xpose.msra.mxu0 0.0
      %317 = vmatprep.subr.mxu0 0.0
      %318 = vmatpush2.xpose.msra.mxu0 0.0
      %319 = vmatprep.subr.mxu0 0.0
      %320 = vmatpush2.xpose.msra.mxu0 0.0
      %321 = vmatprep.subr.mxu0 0.0
      %322 = vmatpush2.xpose.msra.mxu0 0.0
      %323 = vmatprep.subr.mxu0 0.0
      %324 = vmatpush2.xpose.msra.mxu0 0.0
      %325 = vmatprep.subr.mxu0 0.0
      %326 = vmatpush2.xpose.msra.mxu0 0.0
      %327 = vmatprep.subr.mxu0 0.0
      %328 = vmatpush2.xpose.msra.mxu0 0.0
      %329 = vmatprep.mubr.f32.mxu0 0.0
      %330 = vmatmul.mubr.f32.gmra.mxu0 %v260
      %v331 = vpop.f32.mrf.mxu0
      %v332 = vadd.f32 0.0, %v331
      %v333 = vpop.f32.mrf.mxu0
      %334 = vdwg.mxu0
      %v335 = vsel %vm258, %v332, -inf
      %336 = vmax.xlane.f32.xlu0 %v335
      %v337 = vpop.xlane.xlu0 %336
      %v338 = vsub.f32 %v332, %v337
      %v339 = vmul.f32 %v338, 1.442695
      %v340 = vpow.pop %v339
      %v341 = vsel %vm258, %v340, 0.0
      %342 = vadd.xlane.f32.xlu0 %v341
      %v343 = vpop.xlane.xlu0 %342
      %v344 = vrcp.pop %v343
      %v345 = vmul.f32 %v340, %v344
      %v347 = vsel %vm258, %v345, 0
      %349 = vmatprep.subr.mxu0 0.0
      %350 = vmatpush1.msra.mxu0 0.0
      %351 = vmatprep.subr.mxu0 0.0
      %352 = vmatpush1.msra.mxu0 0.0
      %353 = vmatprep.subr.mxu0 0.0
      %354 = vmatpush1.msra.mxu0 0.0
      %355 = vmatprep.subr.mxu0 0.0
      %356 = vmatpush1.msra.mxu0 0.0
      %357 = vmatprep.subr.mxu0 0.0
      %358 = vmatpush1.msra.mxu0 0.0
      %359 = vmatprep.subr.mxu0 0.0
      %360 = vmatpush1.msra.mxu0 0.0
      %361 = vmatprep.subr.mxu0 0.0
      %362 = vmatpush1.msra.mxu0 0.0
      %363 = vmatprep.subr.mxu0 0.0
      %364 = vmatpush1.msra.mxu0 0.0
      %365 = vmatprep.subr.mxu0 0.0
      %366 = vmatpush1.msra.mxu0 0.0
      %367 = vmatprep.subr.mxu0 0.0
      %368 = vmatpush1.msra.mxu0 0.0
      %369 = vmatprep.subr.mxu0 0.0
      %370 = vmatpush1.msra.mxu0 0.0
      %371 = vmatprep.subr.mxu0 0.0
      %372 = vmatpush1.msra.mxu0 0.0
      %373 = vmatprep.subr.mxu0 0.0
      %374 = vmatpush1.msra.mxu0 0.0
      %375 = vmatprep.subr.mxu0 0.0
      %376 = vmatpush1.msra.mxu0 0.0
      %377 = vmatprep.subr.mxu0 0.0
      %378 = vmatpush1.msra.mxu0 0.0
      %379 = vmatprep.subr.mxu0 0.0
      %380 = vmatpush1.msra.mxu0 %v257
      %381 = vmatprep.subr.mxu0 0.0
      %382 = vmatpush2.msra.mxu0 0.0
      %383 = vmatprep.subr.mxu0 0.0
      %384 = vmatpush2.msra.mxu0 0.0
      %385 = vmatprep.subr.mxu0 0.0
      %386 = vmatpush2.msra.mxu0 0.0
      %387 = vmatprep.subr.mxu0 0.0
      %388 = vmatpush2.msra.mxu0 0.0
      %389 = vmatprep.subr.mxu0 0.0
      %390 = vmatpush2.msra.mxu0 0.0
      %391 = vmatprep.subr.mxu0 0.0
      %392 = vmatpush2.msra.mxu0 0.0
      %393 = vmatprep.subr.mxu0 0.0
      %394 = vmatpush2.msra.mxu0 0.0
      %395 = vmatprep.subr.mxu0 0.0
      %396 = vmatpush2.msra.mxu0 0.0
      %397 = vmatprep.subr.mxu0 0.0
      %398 = vmatpush2.msra.mxu0 0.0
      %399 = vmatprep.subr.mxu0 0.0
      %400 = vmatpush2.msra.mxu0 0.0
      %401 = vmatprep.subr.mxu0 0.0
      %402 = vmatpush2.msra.mxu0 0.0
      %403 = vmatprep.subr.mxu0 0.0
      %404 = vmatpush2.msra.mxu0 0.0
      %405 = vmatprep.subr.mxu0 0.0
      %406 = vmatpush2.msra.mxu0 0.0
      %407 = vmatprep.subr.mxu0 0.0
      %408 = vmatpush2.msra.mxu0 0.0
      %409 = vmatprep.subr.mxu0 0.0
      %410 = vmatpush2.msra.mxu0 0.0
      %411 = vmatprep.subr.mxu0 0.0
      %412 = vmatpush2.msra.mxu0 0.0
      %413 = vmatprep.mubr.f32.mxu0 0.0
      %414 = vmatmul.mubr.f32.gmra.mxu0 %v347
      %v415 = vpop.f32.mrf.mxu0
      %v416 = vadd.f32 0.0, %v415
      %v417 = vpop.f32.mrf.mxu0
      %418 = vdwg.mxu0
      %419 = vst.msk [vmem:[#allocation2] sm:$0xff] %vm258, %v416
      %420 = vrot.lane.b32.xlu0 %v255, 120
      %v421 = vpop.permute.xlu0 %420
      %422 = vrot.lane.b32.xlu0 %v256, 120
      %v423 = vpop.permute.xlu0 %422
      %v424 = vsel %vm258, %v421, 0
      %v426 = vsel %vm258, %v423, 0
      %428 = vmatprep.subr.mxu0 0.0
      %429 = vmatpush1.xpose.msra.mxu0 0.0
      %430 = vmatprep.subr.mxu0 0.0
      %431 = vmatpush1.xpose.msra.mxu0 0.0
      %432 = vmatprep.subr.mxu0 0.0
      %433 = vmatpush1.xpose.msra.mxu0 0.0
      %434 = vmatprep.subr.mxu0 0.0
      %435 = vmatpush1.xpose.msra.mxu0 0.0
      %436 = vmatprep.subr.mxu0 0.0
      %437 = vmatpush1.xpose.msra.mxu0 0.0
      %438 = vmatprep.subr.mxu0 0.0
      %439 = vmatpush1.xpose.msra.mxu0 0.0
      %440 = vmatprep.subr.mxu0 0.0
      %441 = vmatpush1.xpose.msra.mxu0 0.0
      %442 = vmatprep.subr.mxu0 0.0
      %443 = vmatpush1.xpose.msra.mxu0 0.0
      %444 = vmatprep.subr.mxu0 0.0
      %445 = vmatpush1.xpose.msra.mxu0 0.0
      %446 = vmatprep.subr.mxu0 0.0
      %447 = vmatpush1.xpose.msra.mxu0 0.0
      %448 = vmatprep.subr.mxu0 0.0
      %449 = vmatpush1.xpose.msra.mxu0 0.0
      %450 = vmatprep.subr.mxu0 0.0
      %451 = vmatpush1.xpose.msra.mxu0 0.0
      %452 = vmatprep.subr.mxu0 0.0
      %453 = vmatpush1.xpose.msra.mxu0 0.0
      %454 = vmatprep.subr.mxu0 0.0
      %455 = vmatpush1.xpose.msra.mxu0 0.0
      %456 = vmatprep.subr.mxu0 0.0
      %457 = vmatpush1.xpose.msra.mxu0 0.0
      %458 = vmatprep.subr.mxu0 0.0
      %459 = vmatpush1.xpose.msra.mxu0 %v426
      %460 = vmatprep.subr.mxu0 0.0
      %461 = vmatpush2.xpose.msra.mxu0 0.0
      %462 = vmatprep.subr.mxu0 0.0
      %463 = vmatpush2.xpose.msra.mxu0 0.0
      %464 = vmatprep.subr.mxu0 0.0
      %465 = vmatpush2.xpose.msra.mxu0 0.0
      %466 = vmatprep.subr.mxu0 0.0
      %467 = vmatpush2.xpose.msra.mxu0 0.0
      %468 = vmatprep.subr.mxu0 0.0
      %469 = vmatpush2.xpose.msra.mxu0 0.0
      %470 = vmatprep.subr.mxu0 0.0
      %471 = vmatpush2.xpose.msra.mxu0 0.0
      %472 = vmatprep.subr.mxu0 0.0
      %473 = vmatpush2.xpose.msra.mxu0 0.0
      %474 = vmatprep.subr.mxu0 0.0
      %475 = vmatpush2.xpose.msra.mxu0 0.0
      %476 = vmatprep.subr.mxu0 0.0
      %477 = vmatpush2.xpose.msra.mxu0 0.0
      %478 = vmatprep.subr.mxu0 0.0
      %479 = vmatpush2.xpose.msra.mxu0 0.0
      %480 = vmatprep.subr.mxu0 0.0
      %481 = vmatpush2.xpose.msra.mxu0 0.0
      %482 = vmatprep.subr.mxu0 0.0
      %483 = vmatpush2.xpose.msra.mxu0 0.0
      %484 = vmatprep.subr.mxu0 0.0
      %485 = vmatpush2.xpose.msra.mxu0 0.0
      %486 = vmatprep.subr.mxu0 0.0
      %487 = vmatpush2.xpose.msra.mxu0 0.0
      %488 = vmatprep.subr.mxu0 0.0
      %489 = vmatpush2.xpose.msra.mxu0 0.0
      %490 = vmatprep.subr.mxu0 0.0
      %491 = vmatpush2.xpose.msra.mxu0 0.0
      %492 = vmatprep.mubr.f32.mxu0 0.0
      %493 = vmatmul.mubr.f32.gmra.mxu0 %v424
      %v494 = vpop.f32.mrf.mxu0
      %v495 = vadd.f32 0.0, %v494
      %v496 = vpop.f32.mrf.mxu0
      %497 = vdwg.mxu0
      %v498 = vsel %vm258, %v495, -inf
      %499 = vmax.xlane.f32.xlu0 %v498
      %v500 = vpop.xlane.xlu0 %499
      %v501 = vsub.f32 %v495, %v500
      %v502 = vmul.f32 %v501, 1.442695
      %v503 = vpow.pop %v502
      %v504 = vsel %vm258, %v503, 0.0
      %505 = vadd.xlane.f32.xlu0 %v504
      %v506 = vpop.xlane.xlu0 %505
      %v507 = vrcp.pop %v506
      %v508 = vmul.f32 %v503, %v507
      %510 = vrot.lane.b32.xlu0 %v257, 120
      %v511 = vpop.permute.xlu0 %510
      %v514 = vsel %vm258, %v508, 0
      %516 = vmatprep.subr.mxu0 0.0
      %517 = vmatpush1.msra.mxu0 0.0
      %518 = vmatprep.subr.mxu0 0.0
      %519 = vmatpush1.msra.mxu0 0.0
      %520 = vmatprep.subr.mxu0 0.0
      %521 = vmatpush1.msra.mxu0 0.0
      %522 = vmatprep.subr.mxu0 0.0
      %523 = vmatpush1.msra.mxu0 0.0
      %524 = vmatprep.subr.mxu0 0.0
      %525 = vmatpush1.msra.mxu0 0.0
      %526 = vmatprep.subr.mxu0 0.0
      %527 = vmatpush1.msra.mxu0 0.0
      %528 = vmatprep.subr.mxu0 0.0
      %529 = vmatpush1.msra.mxu0 0.0
      %530 = vmatprep.subr.mxu0 0.0
      %531 = vmatpush1.msra.mxu0 0.0
      %532 = vmatprep.subr.mxu0 0.0
      %533 = vmatpush1.msra.mxu0 0.0
      %534 = vmatprep.subr.mxu0 0.0
      %535 = vmatpush1.msra.mxu0 0.0
      %536 = vmatprep.subr.mxu0 0.0
      %537 = vmatpush1.msra.mxu0 0.0
      %538 = vmatprep.subr.mxu0 0.0
      %539 = vmatpush1.msra.mxu0 0.0
      %540 = vmatprep.subr.mxu0 0.0
      %541 = vmatpush1.msra.mxu0 0.0
      %542 = vmatprep.subr.mxu0 0.0
      %543 = vmatpush1.msra.mxu0 0.0
      %544 = vmatprep.subr.mxu0 0.0
      %545 = vmatpush1.msra.mxu0 0.0
      %546 = vmatprep.subr.mxu0 0.0
      %547 = vmatpush1.msra.mxu0 %v511
      %548 = vmatprep.subr.mxu0 0.0
      %549 = vmatpush2.msra.mxu0 0.0
      %550 = vmatprep.subr.mxu0 0.0
      %551 = vmatpush2.msra.mxu0 0.0
      %552 = vmatprep.subr.mxu0 0.0
      %553 = vmatpush2.msra.mxu0 0.0
      %554 = vmatprep.subr.mxu0 0.0
      %555 = vmatpush2.msra.mxu0 0.0
      %556 = vmatprep.subr.mxu0 0.0
      %557 = vmatpush2.msra.mxu0 0.0
      %558 = vmatprep.subr.mxu0 0.0
      %559 = vmatpush2.msra.mxu0 0.0
      %560 = vmatprep.subr.mxu0 0.0
      %561 = vmatpush2.msra.mxu0 0.0
      %562 = vmatprep.subr.mxu0 0.0
      %563 = vmatpush2.msra.mxu0 0.0
      %564 = vmatprep.subr.mxu0 0.0
      %565 = vmatpush2.msra.mxu0 0.0
      %566 = vmatprep.subr.mxu0 0.0
      %567 = vmatpush2.msra.mxu0 0.0
      %568 = vmatprep.subr.mxu0 0.0
      %569 = vmatpush2.msra.mxu0 0.0
      %570 = vmatprep.subr.mxu0 0.0
      %571 = vmatpush2.msra.mxu0 0.0
      %572 = vmatprep.subr.mxu0 0.0
      %573 = vmatpush2.msra.mxu0 0.0
      %574 = vmatprep.subr.mxu0 0.0
      %575 = vmatpush2.msra.mxu0 0.0
      %576 = vmatprep.subr.mxu0 0.0
      %577 = vmatpush2.msra.mxu0 0.0
      %578 = vmatprep.subr.mxu0 0.0
      %579 = vmatpush2.msra.mxu0 0.0
      %580 = vmatprep.mubr.f32.mxu0 0.0
      %581 = vmatmul.mubr.f32.gmra.mxu0 %v514
      %v582 = vpop.f32.mrf.mxu0
      %v583 = vadd.f32 0.0, %v582
      %v584 = vpop.f32.mrf.mxu0
      %585 = vdwg.mxu0
      %587 = vrot.lane.b32.xlu0 %v583, 8
      %v588 = vpop.permute.xlu0 %587
      %vm590 = vcmask 130112
      %591 = vst.msk [vmem:[#allocation2] sm:$0xff] %vm590, %v588
      %592 = vrot.lane.b32.xlu0 %v255, 112
      %v593 = vpop.permute.xlu0 %592
      %594 = vrot.lane.b32.xlu0 %v256, 112
      %v595 = vpop.permute.xlu0 %594
      %v596 = vsel %vm258, %v593, 0
      %v598 = vsel %vm258, %v595, 0
      %600 = vmatprep.subr.mxu0 0.0
      %601 = vmatpush1.xpose.msra.mxu0 0.0
      %602 = vmatprep.subr.mxu0 0.0
      %603 = vmatpush1.xpose.msra.mxu0 0.0
      %604 = vmatprep.subr.mxu0 0.0
      %605 = vmatpush1.xpose.msra.mxu0 0.0
      %606 = vmatprep.subr.mxu0 0.0
      %607 = vmatpush1.xpose.msra.mxu0 0.0
      %608 = vmatprep.subr.mxu0 0.0
      %609 = vmatpush1.xpose.msra.mxu0 0.0
      %610 = vmatprep.subr.mxu0 0.0
      %611 = vmatpush1.xpose.msra.mxu0 0.0
      %612 = vmatprep.subr.mxu0 0.0
      %613 = vmatpush1.xpose.msra.mxu0 0.0
      %614 = vmatprep.subr.mxu0 0.0
      %615 = vmatpush1.xpose.msra.mxu0 0.0
      %616 = vmatprep.subr.mxu0 0.0
      %617 = vmatpush1.xpose.msra.mxu0 0.0
      %618 = vmatprep.subr.mxu0 0.0
      %619 = vmatpush1.xpose.msra.mxu0 0.0
      %620 = vmatprep.subr.mxu0 0.0
      %621 = vmatpush1.xpose.msra.mxu0 0.0
      %622 = vmatprep.subr.mxu0 0.0
      %623 = vmatpush1.xpose.msra.mxu0 0.0
      %624 = vmatprep.subr.mxu0 0.0
      %625 = vmatpush1.xpose.msra.mxu0 0.0
      %626 = vmatprep.subr.mxu0 0.0
      %627 = vmatpush1.xpose.msra.mxu0 0.0
      %628 = vmatprep.subr.mxu0 0.0
      %629 = vmatpush1.xpose.msra.mxu0 0.0
      %630 = vmatprep.subr.mxu0 0.0
      %631 = vmatpush1.xpose.msra.mxu0 %v598
      %632 = vmatprep.subr.mxu0 0.0
      %633 = vmatpush2.xpose.msra.mxu0 0.0
      %634 = vmatprep.subr.mxu0 0.0
      %635 = vmatpush2.xpose.msra.mxu0 0.0
      %636 = vmatprep.subr.mxu0 0.0
      %637 = vmatpush2.xpose.msra.mxu0 0.0
      %638 = vmatprep.subr.mxu0 0.0
      %639 = vmatpush2.xpose.msra.mxu0 0.0
      %640 = vmatprep.subr.mxu0 0.0
      %641 = vmatpush2.xpose.msra.mxu0 0.0
      %642 = vmatprep.subr.mxu0 0.0
      %643 = vmatpush2.xpose.msra.mxu0 0.0
      %644 = vmatprep.subr.mxu0 0.0
      %645 = vmatpush2.xpose.msra.mxu0 0.0
      %646 = vmatprep.subr.mxu0 0.0
      %647 = vmatpush2.xpose.msra.mxu0 0.0
      %648 = vmatprep.subr.mxu0 0.0
      %649 = vmatpush2.xpose.msra.mxu0 0.0
      %650 = vmatprep.subr.mxu0 0.0
      %651 = vmatpush2.xpose.msra.mxu0 0.0
      %652 = vmatprep.subr.mxu0 0.0
      %653 = vmatpush2.xpose.msra.mxu0 0.0
      %654 = vmatprep.subr.mxu0 0.0
      %655 = vmatpush2.xpose.msra.mxu0 0.0
      %656 = vmatprep.subr.mxu0 0.0
      %657 = vmatpush2.xpose.msra.mxu0 0.0
      %658 = vmatprep.subr.mxu0 0.0
      %659 = vmatpush2.xpose.msra.mxu0 0.0
      %660 = vmatprep.subr.mxu0 0.0
      %661 = vmatpush2.xpose.msra.mxu0 0.0
      %662 = vmatprep.subr.mxu0 0.0
      %663 = vmatpush2.xpose.msra.mxu0 0.0
      %664 = vmatprep.mubr.f32.mxu0 0.0
      %665 = vmatmul.mubr.f32.gmra.mxu0 %v596
      %v666 = vpop.f32.mrf.mxu0
      %v667 = vadd.f32 0.0, %v666
      %v668 = vpop.f32.mrf.mxu0
      %669 = vdwg.mxu0
      %v670 = vsel %vm258, %v667, -inf
      %671 = vmax.xlane.f32.xlu0 %v670
      %v672 = vpop.xlane.xlu0 %671
      %v673 = vsub.f32 %v667, %v672
      %v674 = vmul.f32 %v673, 1.442695
      %v675 = vpow.pop %v674
      %v676 = vsel %vm258, %v675, 0.0
      %677 = vadd.xlane.f32.xlu0 %v676
      %v678 = vpop.xlane.xlu0 %677
      %v679 = vrcp.pop %v678
      %v680 = vmul.f32 %v675, %v679
      %681 = vrot.lane.b32.xlu0 %v257, 112
      %v682 = vpop.permute.xlu0 %681
      %v685 = vsel %vm258, %v680, 0
      %687 = vmatprep.subr.mxu0 0.0
      %688 = vmatpush1.msra.mxu0 0.0
      %689 = vmatprep.subr.mxu0 0.0
      %690 = vmatpush1.msra.mxu0 0.0
      %691 = vmatprep.subr.mxu0 0.0
      %692 = vmatpush1.msra.mxu0 0.0
      %693 = vmatprep.subr.mxu0 0.0
      %694 = vmatpush1.msra.mxu0 0.0
      %695 = vmatprep.subr.mxu0 0.0
      %696 = vmatpush1.msra.mxu0 0.0
      %697 = vmatprep.subr.mxu0 0.0
      %698 = vmatpush1.msra.mxu0 0.0
      %699 = vmatprep.subr.mxu0 0.0
      %700 = vmatpush1.msra.mxu0 0.0
      %701 = vmatprep.subr.mxu0 0.0
      %702 = vmatpush1.msra.mxu0 0.0
      %703 = vmatprep.subr.mxu0 0.0
      %704 = vmatpush1.msra.mxu0 0.0
      %705 = vmatprep.subr.mxu0 0.0
      %706 = vmatpush1.msra.mxu0 0.0
      %707 = vmatprep.subr.mxu0 0.0
      %708 = vmatpush1.msra.mxu0 0.0
      %709 = vmatprep.subr.mxu0 0.0
      %710 = vmatpush1.msra.mxu0 0.0
      %711 = vmatprep.subr.mxu0 0.0
      %712 = vmatpush1.msra.mxu0 0.0
      %713 = vmatprep.subr.mxu0 0.0
      %714 = vmatpush1.msra.mxu0 0.0
      %715 = vmatprep.subr.mxu0 0.0
      %716 = vmatpush1.msra.mxu0 0.0
      %717 = vmatprep.subr.mxu0 0.0
      %718 = vmatpush1.msra.mxu0 %v682
      %719 = vmatprep.subr.mxu0 0.0
      %720 = vmatpush2.msra.mxu0 0.0
      %721 = vmatprep.subr.mxu0 0.0
      %722 = vmatpush2.msra.mxu0 0.0
      %723 = vmatprep.subr.mxu0 0.0
      %724 = vmatpush2.msra.mxu0 0.0
      %725 = vmatprep.subr.mxu0 0.0
      %726 = vmatpush2.msra.mxu0 0.0
      %727 = vmatprep.subr.mxu0 0.0
      %728 = vmatpush2.msra.mxu0 0.0
      %729 = vmatprep.subr.mxu0 0.0
      %730 = vmatpush2.msra.mxu0 0.0
      %731 = vmatprep.subr.mxu0 0.0
      %732 = vmatpush2.msra.mxu0 0.0
      %733 = vmatprep.subr.mxu0 0.0
      %734 = vmatpush2.msra.mxu0 0.0
      %735 = vmatprep.subr.mxu0 0.0
      %736 = vmatpush2.msra.mxu0 0.0
      %737 = vmatprep.subr.mxu0 0.0
      %738 = vmatpush2.msra.mxu0 0.0
      %739 = vmatprep.subr.mxu0 0.0
      %740 = vmatpush2.msra.mxu0 0.0
      %741 = vmatprep.subr.mxu0 0.0
      %742 = vmatpush2.msra.mxu0 0.0
      %743 = vmatprep.subr.mxu0 0.0
      %744 = vmatpush2.msra.mxu0 0.0
      %745 = vmatprep.subr.mxu0 0.0
      %746 = vmatpush2.msra.mxu0 0.0
      %747 = vmatprep.subr.mxu0 0.0
      %748 = vmatpush2.msra.mxu0 0.0
      %749 = vmatprep.subr.mxu0 0.0
      %750 = vmatpush2.msra.mxu0 0.0
      %751 = vmatprep.mubr.f32.mxu0 0.0
      %752 = vmatmul.mubr.f32.gmra.mxu0 %v685
      %v753 = vpop.f32.mrf.mxu0
      %v754 = vadd.f32 0.0, %v753
      %v755 = vpop.f32.mrf.mxu0
      %756 = vdwg.mxu0
      %758 = vrot.lane.b32.xlu0 %v754, 16
      %v759 = vpop.permute.xlu0 %758
      %vm761 = vcmask 195712
      %762 = vst.msk [vmem:[#allocation2] sm:$0xff] %vm761, %v759
      %763 = vrot.lane.b32.xlu0 %v255, 104
      %v764 = vpop.permute.xlu0 %763
      %765 = vrot.lane.b32.xlu0 %v256, 104
      %v766 = vpop.permute.xlu0 %765
      %v767 = vsel %vm258, %v764, 0
      %v769 = vsel %vm258, %v766, 0
      %771 = vmatprep.subr.mxu0 0.0
      %772 = vmatpush1.xpose.msra.mxu0 0.0
      %773 = vmatprep.subr.mxu0 0.0
      %774 = vmatpush1.xpose.msra.mxu0 0.0
      %775 = vmatprep.subr.mxu0 0.0
      %776 = vmatpush1.xpose.msra.mxu0 0.0
      %777 = vmatprep.subr.mxu0 0.0
      %778 = vmatpush1.xpose.msra.mxu0 0.0
      %779 = vmatprep.subr.mxu0 0.0
      %780 = vmatpush1.xpose.msra.mxu0 0.0
      %781 = vmatprep.subr.mxu0 0.0
      %782 = vmatpush1.xpose.msra.mxu0 0.0
      %783 = vmatprep.subr.mxu0 0.0
      %784 = vmatpush1.xpose.msra.mxu0 0.0
      %785 = vmatprep.subr.mxu0 0.0
      %786 = vmatpush1.xpose.msra.mxu0 0.0
      %787 = vmatprep.subr.mxu0 0.0
      %788 = vmatpush1.xpose.msra.mxu0 0.0
      %789 = vmatprep.subr.mxu0 0.0
      %790 = vmatpush1.xpose.msra.mxu0 0.0
      %791 = vmatprep.subr.mxu0 0.0
      %792 = vmatpush1.xpose.msra.mxu0 0.0
      %793 = vmatprep.subr.mxu0 0.0
      %794 = vmatpush1.xpose.msra.mxu0 0.0
      %795 = vmatprep.subr.mxu0 0.0
      %796 = vmatpush1.xpose.msra.mxu0 0.0
      %797 = vmatprep.subr.mxu0 0.0
      %798 = vmatpush1.xpose.msra.mxu0 0.0
      %799 = vmatprep.subr.mxu0 0.0
      %800 = vmatpush1.xpose.msra.mxu0 0.0
      %801 = vmatprep.subr.mxu0 0.0
      %802 = vmatpush1.xpose.msra.mxu0 %v769
      %803 = vmatprep.subr.mxu0 0.0
      %804 = vmatpush2.xpose.msra.mxu0 0.0
      %805 = vmatprep.subr.mxu0 0.0
      %806 = vmatpush2.xpose.msra.mxu0 0.0
      %807 = vmatprep.subr.mxu0 0.0
      %808 = vmatpush2.xpose.msra.mxu0 0.0
      %809 = vmatprep.subr.mxu0 0.0
      %810 = vmatpush2.xpose.msra.mxu0 0.0
      %811 = vmatprep.subr.mxu0 0.0
      %812 = vmatpush2.xpose.msra.mxu0 0.0
      %813 = vmatprep.subr.mxu0 0.0
      %814 = vmatpush2.xpose.msra.mxu0 0.0
      %815 = vmatprep.subr.mxu0 0.0
      %816 = vmatpush2.xpose.msra.mxu0 0.0
      %817 = vmatprep.subr.mxu0 0.0
      %818 = vmatpush2.xpose.msra.mxu0 0.0
      %819 = vmatprep.subr.mxu0 0.0
      %820 = vmatpush2.xpose.msra.mxu0 0.0
      %821 = vmatprep.subr.mxu0 0.0
      %822 = vmatpush2.xpose.msra.mxu0 0.0
      %823 = vmatprep.subr.mxu0 0.0
      %824 = vmatpush2.xpose.msra.mxu0 0.0
      %825 = vmatprep.subr.mxu0 0.0
      %826 = vmatpush2.xpose.msra.mxu0 0.0
      %827 = vmatprep.subr.mxu0 0.0
      %828 = vmatpush2.xpose.msra.mxu0 0.0
      %829 = vmatprep.subr.mxu0 0.0
      %830 = vmatpush2.xpose.msra.mxu0 0.0
      %831 = vmatprep.subr.mxu0 0.0
      %832 = vmatpush2.xpose.msra.mxu0 0.0
      %833 = vmatprep.subr.mxu0 0.0
      %834 = vmatpush2.xpose.msra.mxu0 0.0
      %835 = vmatprep.mubr.f32.mxu0 0.0
      %836 = vmatmul.mubr.f32.gmra.mxu0 %v767
      %v837 = vpop.f32.mrf.mxu0
      %v838 = vadd.f32 0.0, %v837
      %v839 = vpop.f32.mrf.mxu0
      %840 = vdwg.mxu0
      %v841 = vsel %vm258, %v838, -inf
      %842 = vmax.xlane.f32.xlu0 %v841
      %v843 = vpop.xlane.xlu0 %842
      %v844 = vsub.f32 %v838, %v843
      %v845 = vmul.f32 %v844, 1.442695
      %v846 = vpow.pop %v845
      %v847 = vsel %vm258, %v846, 0.0
      %848 = vadd.xlane.f32.xlu0 %v847
      %v849 = vpop.xlane.xlu0 %848
      %v850 = vrcp.pop %v849
      %v851 = vmul.f32 %v846, %v850
      %852 = vrot.lane.b32.xlu0 %v257, 104
      %v853 = vpop.permute.xlu0 %852
      %v856 = vsel %vm258, %v851, 0
      %858 = vmatprep.subr.mxu0 0.0
      %859 = vmatpush1.msra.mxu0 0.0
      %860 = vmatprep.subr.mxu0 0.0
      %861 = vmatpush1.msra.mxu0 0.0
      %862 = vmatprep.subr.mxu0 0.0
      %863 = vmatpush1.msra.mxu0 0.0
      %864 = vmatprep.subr.mxu0 0.0
      %865 = vmatpush1.msra.mxu0 0.0
      %866 = vmatprep.subr.mxu0 0.0
      %867 = vmatpush1.msra.mxu0 0.0
      %868 = vmatprep.subr.mxu0 0.0
      %869 = vmatpush1.msra.mxu0 0.0
      %870 = vmatprep.subr.mxu0 0.0
      %871 = vmatpush1.msra.mxu0 0.0
      %872 = vmatprep.subr.mxu0 0.0
      %873 = vmatpush1.msra.mxu0 0.0
      %874 = vmatprep.subr.mxu0 0.0
      %875 = vmatpush1.msra.mxu0 0.0
      %876 = vmatprep.subr.mxu0 0.0
      %877 = vmatpush1.msra.mxu0 0.0
      %878 = vmatprep.subr.mxu0 0.0
      %879 = vmatpush1.msra.mxu0 0.0
      %880 = vmatprep.subr.mxu0 0.0
      %881 = vmatpush1.msra.mxu0 0.0
      %882 = vmatprep.subr.mxu0 0.0
      %883 = vmatpush1.msra.mxu0 0.0
      %884 = vmatprep.subr.mxu0 0.0
      %885 = vmatpush1.msra.mxu0 0.0
      %886 = vmatprep.subr.mxu0 0.0
      %887 = vmatpush1.msra.mxu0 0.0
      %888 = vmatprep.subr.mxu0 0.0
      %889 = vmatpush1.msra.mxu0 %v853
      %890 = vmatprep.subr.mxu0 0.0
      %891 = vmatpush2.msra.mxu0 0.0
      %892 = vmatprep.subr.mxu0 0.0
      %893 = vmatpush2.msra.mxu0 0.0
      %894 = vmatprep.subr.mxu0 0.0
      %895 = vmatpush2.msra.mxu0 0.0
      %896 = vmatprep.subr.mxu0 0.0
      %897 = vmatpush2.msra.mxu0 0.0
      %898 = vmatprep.subr.mxu0 0.0
      %899 = vmatpush2.msra.mxu0 0.0
      %900 = vmatprep.subr.mxu0 0.0
      %901 = vmatpush2.msra.mxu0 0.0
      %902 = vmatprep.subr.mxu0 0.0
      %903 = vmatpush2.msra.mxu0 0.0
      %904 = vmatprep.subr.mxu0 0.0
      %905 = vmatpush2.msra.mxu0 0.0
      %906 = vmatprep.subr.mxu0 0.0
      %907 = vmatpush2.msra.mxu0 0.0
      %908 = vmatprep.subr.mxu0 0.0
      %909 = vmatpush2.msra.mxu0 0.0
      %910 = vmatprep.subr.mxu0 0.0
      %911 = vmatpush2.msra.mxu0 0.0
      %912 = vmatprep.subr.mxu0 0.0
      %913 = vmatpush2.msra.mxu0 0.0
      %914 = vmatprep.subr.mxu0 0.0
      %915 = vmatpush2.msra.mxu0 0.0
      %916 = vmatprep.subr.mxu0 0.0
      %917 = vmatpush2.msra.mxu0 0.0
      %918 = vmatprep.subr.mxu0 0.0
      %919 = vmatpush2.msra.mxu0 0.0
      %920 = vmatprep.subr.mxu0 0.0
      %921 = vmatpush2.msra.mxu0 0.0
      %922 = vmatprep.mubr.f32.mxu0 0.0
      %923 = vmatmul.mubr.f32.gmra.mxu0 %v856
      %v924 = vpop.f32.mrf.mxu0
      %v925 = vadd.f32 0.0, %v924
      %v926 = vpop.f32.mrf.mxu0
      %927 = vdwg.mxu0
      %929 = vrot.lane.b32.xlu0 %v925, 24
      %v930 = vpop.permute.xlu0 %929
      %vm932 = vcmask 261312
      %933 = vst.msk [vmem:[#allocation2] sm:$0xff] %vm932, %v930
      %v934 = vld [vmem:[#allocation2] sm:$0xff]
      %v935 = vld [vmem:[%s3] sm:$0xff]
      %v936 = vld [vmem:[%s3 + $0x8] sm:$0xff]
      %v937 = vld [vmem:[%s3 + $0x10] sm:$0xff]
      %v938 = vld [vmem:[%s3 + $0x18] sm:$0xff]
      %v939 = vld [vmem:[%s4] sm:$0x1]
      %v941 = vlaneseq
      %v942 = vshrl.u32 %v941, 7
      %v943 = vsub.s32 0, %v942
      %v944 = vrot.slane %v939, %v943
      %vm946 = vcmask 261120
      %v948 = vsel %vm946, %v934, 0
      %v951 = vsel %vm946, %v935, 0
      %v954 = vsel %vm946, %v936, 0
      %v957 = vsel %vm946, %v937, 0
      %v960 = vsel %vm946, %v938, 0
      %962 = vmatprep.subr.mxu0 0.0
      %963 = vmatpush1.xpose.msra.mxu0 0.0
      %964 = vmatprep.subr.mxu0 0.0
      %965 = vmatpush1.xpose.msra.mxu0 0.0
      %966 = vmatprep.subr.mxu0 0.0
      %967 = vmatpush1.xpose.msra.mxu0 0.0
      %968 = vmatprep.subr.mxu0 0.0
      %969 = vmatpush1.xpose.msra.mxu0 0.0
      %970 = vmatprep.subr.mxu0 0.0
      %971 = vmatpush1.xpose.msra.mxu0 0.0
      %972 = vmatprep.subr.mxu0 0.0
      %973 = vmatpush1.xpose.msra.mxu0 0.0
      %974 = vmatprep.subr.mxu0 0.0
      %975 = vmatpush1.xpose.msra.mxu0 0.0
      %976 = vmatprep.subr.mxu0 0.0
      %977 = vmatpush1.xpose.msra.mxu0 0.0
      %978 = vmatprep.subr.mxu0 0.0
      %979 = vmatpush1.xpose.msra.mxu0 0.0
      %980 = vmatprep.subr.mxu0 0.0
      %981 = vmatpush1.xpose.msra.mxu0 0.0
      %982 = vmatprep.subr.mxu0 0.0
      %983 = vmatpush1.xpose.msra.mxu0 0.0
      %984 = vmatprep.subr.mxu0 0.0
      %985 = vmatpush1.xpose.msra.mxu0 0.0
      %986 = vmatprep.subr.mxu0 0.0
      %987 = vmatpush1.xpose.msra.mxu0 %v960
      %988 = vmatprep.subr.mxu0 0.0
      %989 = vmatpush1.xpose.msra.mxu0 %v957
      %990 = vmatprep.subr.mxu0 0.0
      %991 = vmatpush1.xpose.msra.mxu0 %v954
      %992 = vmatprep.subr.mxu0 0.0
      %993 = vmatpush1.xpose.msra.mxu0 %v951
      %994 = vmatprep.subr.mxu0 0.0
      %995 = vmatpush2.xpose.msra.mxu0 0.0
      %996 = vmatprep.subr.mxu0 0.0
      %997 = vmatpush2.xpose.msra.mxu0 0.0
      %998 = vmatprep.subr.mxu0 0.0
      %999 = vmatpush2.xpose.msra.mxu0 0.0
      %1000 = vmatprep.subr.mxu0 0.0
      %1001 = vmatpush2.xpose.msra.mxu0 0.0
      %1002 = vmatprep.subr.mxu0 0.0
      %1003 = vmatpush2.xpose.msra.mxu0 0.0
      %1004 = vmatprep.subr.mxu0 0.0
      %1005 = vmatpush2.xpose.msra.mxu0 0.0
      %1006 = vmatprep.subr.mxu0 0.0
      %1007 = vmatpush2.xpose.msra.mxu0 0.0
      %1008 = vmatprep.subr.mxu0 0.0
      %1009 = vmatpush2.xpose.msra.mxu0 0.0
      %1010 = vmatprep.subr.mxu0 0.0
      %1011 = vmatpush2.xpose.msra.mxu0 0.0
      %1012 = vmatprep.subr.mxu0 0.0
      %1013 = vmatpush2.xpose.msra.mxu0 0.0
      %1014 = vmatprep.subr.mxu0 0.0
      %1015 = vmatpush2.xpose.msra.mxu0 0.0
      %1016 = vmatprep.subr.mxu0 0.0
      %1017 = vmatpush2.xpose.msra.mxu0 0.0
      %1018 = vmatprep.subr.mxu0 0.0
      %1019 = vmatpush2.xpose.msra.mxu0 0.0
      %1020 = vmatprep.subr.mxu0 0.0
      %1021 = vmatpush2.xpose.msra.mxu0 0.0
      %1022 = vmatprep.subr.mxu0 0.0
      %1023 = vmatpush2.xpose.msra.mxu0 0.0
      %1024 = vmatprep.subr.mxu0 0.0
      %1025 = vmatpush2.xpose.msra.mxu0 0.0
      %1026 = vmatprep.mubr.f32.mxu0 0.0
      %1027 = vmatmul.mubr.f32.gmra.mxu0 %v948
      %v1028 = vpop.f32.mrf.mxu0
      %v1029 = vadd.f32 %v944, %v1028
      %v1030 = vpop.f32.mrf.mxu0
      %1031 = vdwg.mxu0
      %1032 = vst.msk [vmem:[%s253] sm:$0xff] %vm946, %v1029
      %p1033 = scmp.lt.s32.totalorder %s16, 1
      %s1034 = scalar_select %p1033, %s16, 1
      %s1035 = smul.addr %s1034, 8
      %s1036 = scalar_lea.vmem %s5, %s1035
      // Predicated region
      $region41: #{multihead_ca_forward.3} parent=39 // pred_check
        %p1037 = pneg %p154
      $region42: #{multihead_ca_forward.3} parent=39 // pred_check_branch
        %1039 = sbr.rel (%p1037) target = $region44
      $region43: #{multihead_ca_forward.3} parent=39 // pred_region
        _
      $region44: #{multihead_ca_forward.3} parent=39 // pred_fallthru
        _
    $region40: #{multihead_ca_forward.3} parent=5 // pred_fallthru
      _
    %p1040 = scmp.le.s32.totalorder 2, %s11
    // Predicated region
    $region45: #{multihead_ca_forward.3} parent=5 // pred_check
      %p1041 = pneg %p1040
    $region46: #{multihead_ca_forward.3} parent=5 // pred_check_branch
      %1043 = sbr.rel (%p1041) target = $region48
    $region47: #{multihead_ca_forward.3} parent=5 // pred_region
      %s1044 = ssub.s32 %s11, 2
      // Predicated region
      $region49: #{multihead_ca_forward.3} parent=47 // pred_check
        %p1045 = pneg %p160
      $region50: #{multihead_ca_forward.3} parent=47 // pred_check_branch
        %1047 = sbr.rel (%p1045) target = $region52
      $region51: #{multihead_ca_forward.3} parent=47 // pred_region
        %p1048 = scmp.lt.s32.totalorder %s17, 1
        %s1049 = scalar_select %p1048, %s17, 1
        %s1050 = smul.addr %s1049, 8
        %s1051 = scalar_lea.vmem %s5, %s1050
      $region52: #{multihead_ca_forward.3} parent=47 // pred_fallthru
        _
    $region48: #{multihead_ca_forward.3} parent=5 // pred_fallthru
      _
  $region6: #{multihead_ca_forward.3} parent=0 // loop_footer
    %s15 = sadd.s32 1, %s11
  $region7: #{multihead_ca_forward.3} parent=0 // loop_footer_branch
    %10 = sbr.rel target = $region3
  $region8: #{multihead_ca_forward.3} parent=0 // loop_exit
    _

</llo_original>
